<compile_context>
chip_gen: v7x
topology: tpu7x:2x2x1
jax: 0.10.0
libtpu: 0.0.40
codegen_flags: <defaults>
</compile_context>

<pallas_src>
import functools

import jax
import jax.numpy as jnp
import numpy as np
from jax import lax
from jax.experimental import pallas as pl
from jax.experimental.pallas import tpu as pltpu


# ------------------------------ helpers ------------------------------------ #

def _round_up(n, m):
    return ((n + m - 1) // m) * m


def _pick_tile(n, target):
    """Largest tile t <= target with n % t == 0, preferring multiples of 128,
    then 16 (bf16 sublane packing), then 8."""
    if n <= target:
        return n
    for align in (128, 16, 8):
        t = (target // align) * align
        while t >= align:
            if n % t == 0:
                return t
            t -= align
    # TODO(synk): pad N / Nkv (with kv masking in the softmax) instead of
    # returning the full dimension, which can exceed the VMEM budget.
    return n


def _vmem_limit_bytes():
    """Per-generation VMEM budget: ~3/4 of physical, capped at 100 MiB
    (v5e/v6e -> ~96 MiB, v7x -> ~48 MiB)."""
    try:
        cap = pltpu.get_tpu_info().vmem_capacity_bytes
    except Exception:
        return 48 * 1024 * 1024
    return int(min(cap * 3 // 4, 100 * 1024 * 1024))


_VMEM_LIMIT = _vmem_limit_bytes()


# ----------------------------- Pallas kernels ------------------------------ #

def _proj_pool_kernel(x_ref, w_ref, bt_ref, bpg_ref,
                      theta_ref, phit_ref, g_ref, *, c2p, tkv):
    """Fused theta/phi/g 1x1x1 convs (one packed matmul) + (1,2,2) max-pool
    on phi/g + one-shot phi transpose.

    x_ref:     (1, 4, tkv, C)    f32  (4 = the 2x2 pool-window pixels)
    w_ref:     (C, 3*c2p)        bf16 (packed [theta | phi | g], zero-padded)
    bt_ref:    (1, c2p)          f32  theta bias
    bpg_ref:   (1, 2*c2p)        f32  [phi | g] bias
    theta_ref: (1, 4, tkv, c2p)  bf16 (unpooled, query order)
    phit_ref:  (1, c2p, tkv)     bf16 (max-pooled phi, pre-transposed)
    g_ref:     (1, tkv, c2p)     bf16 (max-pooled g)
    """
    C = x_ref.shape[-1]
    x = x_ref[0].reshape(4 * tkv, C).astype(jnp.bfloat16)
    # one MXU call for all four pool-window pixel groups and all 3 branches
    pq = jnp.dot(x, w_ref[...], preferred_element_type=jnp.float32)

    theta = pq[:, :c2p] + bt_ref[...]
    theta_ref[0] = theta.reshape(4, tkv, c2p).astype(theta_ref.dtype)

    # (1,2,2) max-pool == max over the 4 row-groups; bias added after the max
    pg = jnp.maximum(jnp.maximum(pq[0 * tkv:1 * tkv, c2p:],
                                 pq[1 * tkv:2 * tkv, c2p:]),
                     jnp.maximum(pq[2 * tkv:3 * tkv, c2p:],
                                 pq[3 * tkv:4 * tkv, c2p:])) + bpg_ref[...]
    # phi emitted pre-transposed so kernel 2 never re-transposes it per q tile
    phit_ref[0] = jnp.transpose(pg[:, :c2p]).astype(phit_ref.dtype)
    g_ref[0] = pg[:, c2p:].astype(g_ref.dtype)


def _attn_kernel(theta_ref, phit_ref, g_ref, x_ref, ww_ref, shift_ref, z_ref):
    """Query-tiled non-local attention + folded (W conv + eval-BN) + residual.

    theta_ref: (1, tq, c2p)   bf16
    phit_ref:  (1, c2p, Nkv)  bf16 (resident across q tiles)
    g_ref:     (1, Nkv, c2p)  bf16 (resident across q tiles)
    x_ref:     (1, tq, C)     f32  residual
    ww_ref:    (c2p, C)       bf16 (W weight with BN scale folded in)
    shift_ref: (1, C)         f32  (W bias * BN scale + BN shift)
    z_ref:     (1, tq, C)     f32
    """
    theta = theta_ref[0]                                       # (tq, c2p)
    f = jnp.dot(theta, phit_ref[0],
                preferred_element_type=jnp.float32)            # (tq, Nkv)
    f = f - jnp.max(f, axis=-1, keepdims=True)
    p = jnp.exp(f)
    s = jnp.sum(p, axis=-1, keepdims=True)                     # (tq, 1)
    # deferred softmax normalisation: scale the (tq, c2p) PV result instead of
    # the (tq, Nkv) score matrix; 1/s via the EUP approx reciprocal.
    y = jnp.dot(p.astype(jnp.bfloat16), g_ref[0],
                preferred_element_type=jnp.float32)            # (tq, c2p)
    y = y * pl.reciprocal(s, approx=True)
    wy = jnp.dot(y.astype(jnp.bfloat16), ww_ref[...],
                 preferred_element_type=jnp.float32) + shift_ref[...]
    z_ref[0] = (wy + x_ref[0]).astype(z_ref.dtype)


# ------------------------------ pallas_call glue ---------------------------- #

def _proj_pool_pallas(x_grp, w_pack, b_theta, b_pg, c2p, tkv):
    B, _, Nkv, C = x_grp.shape
    return pl.pallas_call(
        functools.partial(_proj_pool_kernel, c2p=c2p, tkv=tkv),
        out_shape=(jax.ShapeDtypeStruct((B, 4, Nkv, c2p), jnp.bfloat16),
                   jax.ShapeDtypeStruct((B, c2p, Nkv), jnp.bfloat16),
                   jax.ShapeDtypeStruct((B, Nkv, c2p), jnp.bfloat16)),
        grid=(B, Nkv // tkv),
        in_specs=[pl.BlockSpec((1, 4, tkv, C), lambda b, j: (b, 0, j, 0)),
                  pl.BlockSpec((C, 3 * c2p), lambda b, j: (0, 0)),
                  pl.BlockSpec((1, c2p), lambda b, j: (0, 0)),
                  pl.BlockSpec((1, 2 * c2p), lambda b, j: (0, 0))],
        out_specs=(pl.BlockSpec((1, 4, tkv, c2p), lambda b, j: (b, 0, j, 0)),
                   pl.BlockSpec((1, c2p, tkv), lambda b, j: (b, 0, j)),
                   pl.BlockSpec((1, tkv, c2p), lambda b, j: (b, j, 0))),
        compiler_params=pltpu.CompilerParams(
            dimension_semantics=("parallel", "parallel"),
            vmem_limit_bytes=_VMEM_LIMIT),
    )(x_grp, w_pack, b_theta, b_pg)


def _attn_pallas(theta, phit, g, x_q, ww, shift, tq):
    B, N, c2p = theta.shape
    Nkv = g.shape[1]
    C = x_q.shape[2]
    return pl.pallas_call(
        _attn_kernel,
        out_shape=jax.ShapeDtypeStruct((B, N, C), jnp.float32),
        grid=(B, N // tq),
        in_specs=[pl.BlockSpec((1, tq, c2p), lambda b, i: (b, i, 0)),
                  # constant index_map over i -> phi^T / g stay resident in
                  # VMEM across all query tiles.
                  # TODO(synk): pipeline_mode=pl.Buffered(1) on the resident /
                  # constant blocks would halve their VMEM footprint on v7x.
                  pl.BlockSpec((1, c2p, Nkv), lambda b, i: (b, 0, 0)),
                  pl.BlockSpec((1, Nkv, c2p), lambda b, i: (b, 0, 0)),
                  pl.BlockSpec((1, tq, C), lambda b, i: (b, i, 0)),
                  pl.BlockSpec((c2p, C), lambda b, i: (0, 0)),
                  pl.BlockSpec((1, C), lambda b, i: (0, 0))],
        out_specs=pl.BlockSpec((1, tq, C), lambda b, i: (b, i, 0)),
        compiler_params=pltpu.CompilerParams(
            dimension_semantics=("parallel", "parallel"),
            vmem_limit_bytes=_VMEM_LIMIT),
    )(theta, phit, g, x_q, ww, shift)


# --------------------------- parameters & forward --------------------------- #

def init_params(key, in_channels):
    """Synthetic params with the shapes NONLocalBlock3D declares.

    1x1x1 Conv3d weights are (out_ch, in_ch) matrices.  The final BN affine is
    zero-initialised exactly like the PyTorch module; running stats are the
    PyTorch defaults (mean=0, var=1)."""
    c2 = max(in_channels // 2, 1)
    ks = jax.random.split(key, 8)
    rnd = lambda k, shape: 0.1 * jax.random.normal(k, shape, jnp.float32)
    return dict(
        theta_w=rnd(ks[0], (c2, in_channels)), theta_b=rnd(ks[1], (c2,)),
        phi_w=rnd(ks[2], (c2, in_channels)),   phi_b=rnd(ks[3], (c2,)),
        g_w=rnd(ks[4], (c2, in_channels)),     g_b=rnd(ks[5], (c2,)),
        w_w=rnd(ks[6], (in_channels, c2)),     w_b=rnd(ks[7], (in_channels,)),
        bn_gamma=jnp.zeros((in_channels,), jnp.float32),
        bn_beta=jnp.zeros((in_channels,), jnp.float32),
        bn_mean=jnp.zeros((in_channels,), jnp.float32),
        bn_var=jnp.ones((in_channels,), jnp.float32),
    )


@functools.partial(jax.jit,
                   static_argnames=("n_segment", "tq_target", "tkv_target"))
def nl3d_wrapper_forward(x_nchw, params, n_segment, bn_eps=1e-5,
                         tq_target=128, tkv_target=256):
    """NL3DWrapper.forward: x -> block(x) -> reshape -> NONLocalBlock3D -> reshape.

    tq_target=128 suits v5e/v7x; pass tq_target=256 on v6e (96+ MiB VMEM)."""
    # TODO(synk): `block` is an externally-supplied ResNet bottleneck whose
    # internals are not specified by this module; it is treated as identity.
    nt, c, h, w = x_nchw.shape
    assert nt % n_segment == 0 and h % 2 == 0 and w % 2 == 0
    b, t = nt // n_segment, n_segment
    h2, w2 = h // 2, w // 2
    Nkv = t * h2 * w2
    N = 4 * Nkv
    c2 = params["theta_w"].shape[0]
    c2p = max(_round_up(c2, 128), 128)          # lane-aligned packed splits
    pad = c2p - c2

    # Re-group pixels so each 2x2 pool window's 4 pixels share a row index in
    # 4 contiguous groups: (b, dy*2+dx, t*h2*w2, c).  Only the f32 copy is
    # materialised in HBM; kernel 1 casts to bf16 in VMEM.
    x7 = x_nchw.reshape(b, t, c, h2, 2, w2, 2)
    x_grp = jnp.transpose(x7, (0, 4, 6, 1, 3, 5, 2)).reshape(b, 4, Nkv, c)
    x_q = x_grp.reshape(b, N, c)                # f32 residual, query order

    def pad_rows(m):                            # (c2, X) -> (c2p, X)
        return jnp.pad(m, ((0, pad), (0, 0))) if pad else m

    def pad_vec(v):                             # (c2,) -> (c2p,)
        return jnp.pad(v, (0, pad)) if pad else v

    # Pack theta|phi|g 1x1x1 conv weights into one bf16 matmul operand.
    w_pack = jnp.concatenate(
        [pad_rows(params["theta_w"]), pad_rows(params["phi_w"]),
         pad_rows(params["g_w"])], axis=0).T.astype(jnp.bfloat16)  # (C, 3*c2p)
    b_theta = pad_vec(params["theta_b"]).reshape(1, c2p)
    b_pg = jnp.concatenate(
        [pad_vec(params["phi_b"]), pad_vec(params["g_b"])]).reshape(1, 2 * c2p)

    # Fold eval-mode BatchNorm3d and the W bias into the W weight + one shift.
    bn_scale = params["bn_gamma"] / jnp.sqrt(params["bn_var"] + bn_eps)
    bn_shift = params["bn_beta"] - params["bn_mean"] * bn_scale
    ww = pad_rows(params["w_w"].T * bn_scale[None, :]).astype(jnp.bfloat16)
    shift = (params["w_b"] * bn_scale + bn_shift).reshape(1, c)

    tkv = _pick_tile(Nkv, tkv_target)
    tq = _pick_tile(N, tq_target)

    theta4, phit, g = _proj_pool_pallas(x_grp, w_pack, b_theta, b_pg, c2p, tkv)
    theta = theta4.reshape(b, N, c2p)           # bf16, query order

    z_q = _attn_pallas(theta, phit, g, x_q, ww, shift, tq)

    # undo the pixel-group permutation -> (nt, c, h, w)
    z7 = z_q.reshape(b, 2, 2, t, h2, w2, c)
    z = jnp.transpose(z7, (0, 3, 6, 4, 1, 5, 2)).reshape(nt, c, h, w)
    return z


# --------------------------- pure-JAX reference ----------------------------- #

def nl3d_wrapper_reference(x_nchw, params, n_segment, bn_eps=1e-5):
    nt, c, h, w = x_nchw.shape
    b, t = nt // n_segment, n_segment
    x5 = jnp.transpose(x_nchw.reshape(b, t, c, h, w), (0, 2, 1, 3, 4))

    def conv1(v, w_, b_):
        return jnp.einsum("oc,bcthw->bothw", w_, v) + b_[None, :, None, None, None]

    def pool(v):
        bb, cc, tt, hh, ww = v.shape
        return jnp.max(v.reshape(bb, cc, tt, hh // 2, 2, ww // 2, 2), axis=(4, 6))

    c2 = params["theta_w"].shape[0]
    g_x = pool(conv1(x5, params["g_w"], params["g_b"])).reshape(b, c2, -1).transpose(0, 2, 1)
    theta_x = conv1(x5, params["theta_w"], params["theta_b"]).reshape(b, c2, -1).transpose(0, 2, 1)
    phi_x = pool(conv1(x5, params["phi_w"], params["phi_b"])).reshape(b, c2, -1)
    f = jnp.matmul(theta_x, phi_x)
    f_div_c = jax.nn.softmax(f, axis=-1)
    y = jnp.matmul(f_div_c, g_x)
    y5 = y.transpose(0, 2, 1).reshape(b, c2, t, h, w)
    w_y = conv1(y5, params["w_w"], params["w_b"])
    pc = lambda v: v[None, :, None, None, None]
    w_y = (w_y - pc(params["bn_mean"])) / jnp.sqrt(pc(params["bn_var"]) + bn_eps) \
          * pc(params["bn_gamma"]) + pc(params["bn_beta"])
    z5 = w_y + x5
    return jnp.transpose(z5, (0, 2, 1, 3, 4)).reshape(nt, c, h, w)


# ----------------------------------- main ----------------------------------- #

if __name__ == "__main__":
    key = jax.random.PRNGKey(0)
    n_segment = 4
    nt, c, h, w = 8, 16, 8, 8          # b=2 clips, t=4 frames, 16 channels, 8x8
    kx, kp, kb1, kb2 = jax.random.split(key, 4)

    x = jax.random.normal(kx, (nt, c, h, w), jnp.float32)
    params = init_params(kp, c)

    # Module-faithful run (PyTorch zero-inits the final BN affine, so the
    # non-local branch contributes exactly 0 at init; the full path still runs
    # and the query re-ordering / residual must round-trip exactly).
    out = nl3d_wrapper_forward(x, params, n_segment)
    jax.block_until_ready(out)
    assert out.shape == (nt, c, h, w)
    np.testing.assert_allclose(np.asarray(out),
                               np.asarray(nl3d_wrapper_reference(x, params, n_segment)),
                               rtol=2e-5, atol=2e-5)

    # Exercise the full attention path numerically with a non-zero BN affine.
    # Kernels use bf16 MXU operands (f32 accumulation) and an approx EUP
    # reciprocal, so compare against the f32 reference at bf16 tolerance.
    params_chk = dict(params)
    params_chk["bn_gamma"] = jax.random.normal(kb1, (c,), jnp.float32)
    params_chk["bn_beta"] = jax.random.normal(kb2, (c,), jnp.float32)
    out_chk = nl3d_wrapper_forward(x, params_chk, n_segment)
    ref_chk = nl3d_wrapper_reference(x, params_chk, n_segment)
    jax.block_until_ready((out_chk, ref_chk))
    np.testing.assert_allclose(np.asarray(out_chk), np.asarray(ref_chk),
                               rtol=5e-2, atol=5e-2)

    print("KERNEL_OK")
</pallas_src>

<mosaic_0001>
module attributes {stable_mosaic.version = 11 : i64} {
  func.func @_proj_pool_kernel(%arg0: i32, %arg1: i32, %arg2: memref<1x4x64x16xf32, #tpu.memory_space<vmem>>, %arg3: memref<16x384xbf16, #tpu.memory_space<vmem>>, %arg4: memref<1x128xf32, #tpu.memory_space<vmem>>, %arg5: memref<1x256xf32, #tpu.memory_space<vmem>>, %arg6: memref<1x4x64x128xbf16, #tpu.memory_space<vmem>>, %arg7: memref<1x128x64xbf16, #tpu.memory_space<vmem>>, %arg8: memref<1x64x128xbf16, #tpu.memory_space<vmem>>) attributes {dimension_semantics = [#tpu.dimension_semantics<parallel>, #tpu.dimension_semantics<parallel>], iteration_bounds = array<i64: 2, 1>, scalar_prefetch = 0 : i64, scratch_operands = 0 : i64, tpu.core_type = #tpu.core_type<tc>, window_params = [{transform_indices = @transform_0, window_bounds = array<i64: 1, 4, 64, 16>}, {pipeline_mode = #tpu.pipeline_mode<synchronous>, transform_indices = @transform_1, window_bounds = array<i64: 16, 384>}, {pipeline_mode = #tpu.pipeline_mode<synchronous>, transform_indices = @transform_2, window_bounds = array<i64: 1, 128>}, {pipeline_mode = #tpu.pipeline_mode<synchronous>, transform_indices = @transform_3, window_bounds = array<i64: 1, 256>}, {transform_indices = @transform_4, window_bounds = array<i64: 1, 4, 64, 128>}, {transform_indices = @transform_5, window_bounds = array<i64: 1, 128, 64>}, {transform_indices = @transform_6, window_bounds = array<i64: 1, 64, 128>}]} {
    %c0 = arith.constant 0 : index
    %c0_0 = arith.constant 0 : index
    %c0_1 = arith.constant 0 : index
    %c0_2 = arith.constant 0 : index
    %0 = vector.load %arg2[%c0, %c0_0, %c0_1, %c0_2] : memref<1x4x64x16xf32, #tpu.memory_space<vmem>>, vector<1x4x64x16xf32>
    %1 = vector.shape_cast %0 : vector<1x4x64x16xf32> to vector<4x64x16xf32>
    %2 = vector.shape_cast %1 : vector<4x64x16xf32> to vector<256x16xf32>
    %3 = arith.truncf %2 : vector<256x16xf32> to vector<256x16xbf16>
    %c0_3 = arith.constant 0 : index
    %c0_4 = arith.constant 0 : index
    %4 = vector.load %arg3[%c0_3, %c0_4] : memref<16x384xbf16, #tpu.memory_space<vmem>>, vector<16x384xbf16>
    %cst = arith.constant dense<0.000000e+00> : vector<256x384xf32>
    %5 = tpu.matmul %3, %4, %cst {dimension_numbers = #tpu.dot_dimension_numbers<[1], [0], [0], [1], [0, 0, 1, 1], [], []>} : vector<256x16xbf16>, vector<16x384xbf16>, vector<256x384xf32> -> vector<256x384xf32>
    %6 = vector.extract_strided_slice %5 {offsets = [0, 0], sizes = [256, 128], strides = [1, 1]} : vector<256x384xf32> to vector<256x128xf32>
    %c0_5 = arith.constant 0 : index
    %c0_6 = arith.constant 0 : index
    %7 = vector.load %arg4[%c0_5, %c0_6] : memref<1x128xf32, #tpu.memory_space<vmem>>, vector<1x128xf32>
    %8 = vector.broadcast %7 : vector<1x128xf32> to vector<256x128xf32>
    %9 = arith.addf %6, %8 : vector<256x128xf32>
    %10 = vector.shape_cast %9 : vector<256x128xf32> to vector<4x64x128xf32>
    %11 = arith.truncf %10 : vector<4x64x128xf32> to vector<4x64x128xbf16>
    %c0_7 = arith.constant 0 : index
    %c0_8 = arith.constant 0 : index
    %c0_9 = arith.constant 0 : index
    %c0_10 = arith.constant 0 : index
    %12 = vector.load %arg6[%c0_7, %c0_8, %c0_9, %c0_10] : memref<1x4x64x128xbf16, #tpu.memory_space<vmem>>, vector<1x4x64x128xbf16>
    %13 = vector.shape_cast %12 : vector<1x4x64x128xbf16> to vector<4x64x128xbf16>
    %14 = vector.shape_cast %11 : vector<4x64x128xbf16> to vector<1x4x64x128xbf16>
    tpu.vector_store %arg6[%c0_7, %c0_8, %c0_9, %c0_10], %14 {strides = array<i32>} : memref<1x4x64x128xbf16, #tpu.memory_space<vmem>>, vector<1x4x64x128xbf16>,
    %15 = vector.extract_strided_slice %5 {offsets = [0, 128], sizes = [64, 256], strides = [1, 1]} : vector<256x384xf32> to vector<64x256xf32>
    %16 = vector.extract_strided_slice %5 {offsets = [64, 128], sizes = [64, 256], strides = [1, 1]} : vector<256x384xf32> to vector<64x256xf32>
    %17 = arith.maximumf %15, %16 : vector<64x256xf32>
    %18 = vector.extract_strided_slice %5 {offsets = [128, 128], sizes = [64, 256], strides = [1, 1]} : vector<256x384xf32> to vector<64x256xf32>
    %19 = vector.extract_strided_slice %5 {offsets = [192, 128], sizes = [64, 256], strides = [1, 1]} : vector<256x384xf32> to vector<64x256xf32>
    %20 = arith.maximumf %18, %19 : vector<64x256xf32>
    %21 = arith.maximumf %17, %20 : vector<64x256xf32>
    %c0_11 = arith.constant 0 : index
    %c0_12 = arith.constant 0 : index
    %22 = vector.load %arg5[%c0_11, %c0_12] : memref<1x256xf32, #tpu.memory_space<vmem>>, vector<1x256xf32>
    %23 = vector.broadcast %22 : vector<1x256xf32> to vector<64x256xf32>
    %24 = arith.addf %21, %23 : vector<64x256xf32>
    %25 = vector.extract_strided_slice %24 {offsets = [0, 0], sizes = [64, 128], strides = [1, 1]} : vector<64x256xf32> to vector<64x128xf32>
    %26 = tpu.transpose %25, [1, 0] : vector<64x128xf32> -> vector<128x64xf32>
    %27 = arith.truncf %26 : vector<128x64xf32> to vector<128x64xbf16>
    %c0_13 = arith.constant 0 : index
    %c0_14 = arith.constant 0 : index
    %c0_15 = arith.constant 0 : index
    %28 = vector.load %arg7[%c0_13, %c0_14, %c0_15] : memref<1x128x64xbf16, #tpu.memory_space<vmem>>, vector<1x128x64xbf16>
    %29 = vector.shape_cast %28 : vector<1x128x64xbf16> to vector<128x64xbf16>
    %30 = vector.shape_cast %27 : vector<128x64xbf16> to vector<1x128x64xbf16>
    tpu.vector_store %arg7[%c0_13, %c0_14, %c0_15], %30 {strides = array<i32>} : memref<1x128x64xbf16, #tpu.memory_space<vmem>>, vector<1x128x64xbf16>,
    %31 = vector.extract_strided_slice %24 {offsets = [0, 128], sizes = [64, 128], strides = [1, 1]} : vector<64x256xf32> to vector<64x128xf32>
    %32 = arith.truncf %31 : vector<64x128xf32> to vector<64x128xbf16>
    %c0_16 = arith.constant 0 : index
    %c0_17 = arith.constant 0 : index
    %c0_18 = arith.constant 0 : index
    %33 = vector.load %arg8[%c0_16, %c0_17, %c0_18] : memref<1x64x128xbf16, #tpu.memory_space<vmem>>, vector<1x64x128xbf16>
    %34 = vector.shape_cast %33 : vector<1x64x128xbf16> to vector<64x128xbf16>
    %35 = vector.shape_cast %32 : vector<64x128xbf16> to vector<1x64x128xbf16>
    tpu.vector_store %arg8[%c0_16, %c0_17, %c0_18], %35 {strides = array<i32>} : memref<1x64x128xbf16, #tpu.memory_space<vmem>>, vector<1x64x128xbf16>,
    return
  }
  func.func @transform_0(%arg0: i32, %arg1: i32) -> (i32, i32, i32, i32) {
    %c0_i32 = arith.constant 0 : i32
    %c0_i32_0 = arith.constant 0 : i32
    %c0_i32_1 = arith.constant 0 : i32
    return %arg0, %c0_i32, %arg1, %c0_i32_0 : i32, i32, i32, i32
  }
  func.func @transform_1(%arg0: i32, %arg1: i32) -> (i32, i32) {
    %c0_i32 = arith.constant 0 : i32
    %c0_i32_0 = arith.constant 0 : i32
    %c0_i32_1 = arith.constant 0 : i32
    return %c0_i32, %c0_i32_0 : i32, i32
  }
  func.func @transform_2(%arg0: i32, %arg1: i32) -> (i32, i32) {
    %c0_i32 = arith.constant 0 : i32
    %c0_i32_0 = arith.constant 0 : i32
    %c0_i32_1 = arith.constant 0 : i32
    return %c0_i32, %c0_i32_0 : i32, i32
  }
  func.func @transform_3(%arg0: i32, %arg1: i32) -> (i32, i32) {
    %c0_i32 = arith.constant 0 : i32
    %c0_i32_0 = arith.constant 0 : i32
    %c0_i32_1 = arith.constant 0 : i32
    return %c0_i32, %c0_i32_0 : i32, i32
  }
  func.func @transform_4(%arg0: i32, %arg1: i32) -> (i32, i32, i32, i32) {
    %c0_i32 = arith.constant 0 : i32
    %c0_i32_0 = arith.constant 0 : i32
    %c0_i32_1 = arith.constant 0 : i32
    return %arg0, %c0_i32, %arg1, %c0_i32_0 : i32, i32, i32, i32
  }
  func.func @transform_5(%arg0: i32, %arg1: i32) -> (i32, i32, i32) {
    %c0_i32 = arith.constant 0 : i32
    %c0_i32_0 = arith.constant 0 : i32
    return %arg0, %c0_i32, %arg1 : i32, i32, i32
  }
  func.func @transform_6(%arg0: i32, %arg1: i32) -> (i32, i32, i32) {
    %c0_i32 = arith.constant 0 : i32
    %c0_i32_0 = arith.constant 0 : i32
    return %arg0, %arg1, %c0_i32 : i32, i32, i32
  }
}

module attributes {stable_mosaic.version = 11 : i64} {
  func.func @_attn_kernel(%arg0: i32, %arg1: i32, %arg2: memref<1x128x128xbf16, #tpu.memory_space<vmem>>, %arg3: memref<1x128x64xbf16, #tpu.memory_space<vmem>>, %arg4: memref<1x64x128xbf16, #tpu.memory_space<vmem>>, %arg5: memref<1x128x16xf32, #tpu.memory_space<vmem>>, %arg6: memref<128x16xbf16, #tpu.memory_space<vmem>>, %arg7: memref<1x16xf32, #tpu.memory_space<vmem>>, %arg8: memref<1x128x16xf32, #tpu.memory_space<vmem>>) attributes {dimension_semantics = [#tpu.dimension_semantics<parallel>, #tpu.dimension_semantics<parallel>], iteration_bounds = array<i64: 2, 2>, scalar_prefetch = 0 : i64, scratch_operands = 0 : i64, tpu.core_type = #tpu.core_type<tc>, window_params = [{transform_indices = @transform_0, window_bounds = array<i64: 1, 128, 128>}, {transform_indices = @transform_1, window_bounds = array<i64: 1, 128, 64>}, {transform_indices = @transform_2, window_bounds = array<i64: 1, 64, 128>}, {transform_indices = @transform_3, window_bounds = array<i64: 1, 128, 16>}, {pipeline_mode = #tpu.pipeline_mode<synchronous>, transform_indices = @transform_4, window_bounds = array<i64: 128, 16>}, {pipeline_mode = #tpu.pipeline_mode<synchronous>, transform_indices = @transform_5, window_bounds = array<i64: 1, 16>}, {transform_indices = @transform_6, window_bounds = array<i64: 1, 128, 16>}]} {
    %c0 = arith.constant 0 : index
    %c0_0 = arith.constant 0 : index
    %c0_1 = arith.constant 0 : index
    %0 = vector.load %arg2[%c0, %c0_0, %c0_1] : memref<1x128x128xbf16, #tpu.memory_space<vmem>>, vector<1x128x128xbf16>
    %1 = vector.shape_cast %0 : vector<1x128x128xbf16> to vector<128x128xbf16>
    %c0_2 = arith.constant 0 : index
    %c0_3 = arith.constant 0 : index
    %c0_4 = arith.constant 0 : index
    %2 = vector.load %arg3[%c0_2, %c0_3, %c0_4] : memref<1x128x64xbf16, #tpu.memory_space<vmem>>, vector<1x128x64xbf16>
    %3 = vector.shape_cast %2 : vector<1x128x64xbf16> to vector<128x64xbf16>
    %cst = arith.constant dense<0.000000e+00> : vector<128x64xf32>
    %4 = tpu.matmul %1, %3, %cst {dimension_numbers = #tpu.dot_dimension_numbers<[1], [0], [0], [1], [0, 0, 1, 1], [], []>} : vector<128x128xbf16>, vector<128x64xbf16>, vector<128x64xf32> -> vector<128x64xf32>
    %cst_5 = arith.constant dense<0xFF800000> : vector<128xf32>
    %5 = vector.multi_reduction <maximumf>, %4, %cst_5 [1] : vector<128x64xf32> to vector<128xf32>
    %6 = vector.shape_cast %5 : vector<128xf32> to vector<128x1xf32>
    %7 = vector.broadcast %6 : vector<128x1xf32> to vector<128x64xf32>
    %8 = arith.subf %4, %7 : vector<128x64xf32>
    %9 = math.exp %8 : vector<128x64xf32>
    %cst_6 = arith.constant dense<0.000000e+00> : vector<128xf32>
    %10 = vector.multi_reduction <add>, %9, %cst_6 [1] : vector<128x64xf32> to vector<128xf32>
    %11 = vector.shape_cast %10 : vector<128xf32> to vector<128x1xf32>
    %12 = arith.truncf %9 : vector<128x64xf32> to vector<128x64xbf16>
    %c0_7 = arith.constant 0 : index
    %c0_8 = arith.constant 0 : index
    %c0_9 = arith.constant 0 : index
    %13 = vector.load %arg4[%c0_7, %c0_8, %c0_9] : memref<1x64x128xbf16, #tpu.memory_space<vmem>>, vector<1x64x128xbf16>
    %14 = vector.shape_cast %13 : vector<1x64x128xbf16> to vector<64x128xbf16>
    %cst_10 = arith.constant dense<0.000000e+00> : vector<128x128xf32>
    %15 = tpu.matmul %12, %14, %cst_10 {dimension_numbers = #tpu.dot_dimension_numbers<[1], [0], [0], [1], [0, 0, 1, 1], [], []>} : vector<128x64xbf16>, vector<64x128xbf16>, vector<128x128xf32> -> vector<128x128xf32>
    %16 = tpu.reciprocal %11 {approx = true} : vector<128x1xf32> -> vector<128x1xf32>
    %17 = vector.broadcast %16 : vector<128x1xf32> to vector<128x128xf32>
    %18 = arith.mulf %15, %17 : vector<128x128xf32>
    %19 = arith.truncf %18 : vector<128x128xf32> to vector<128x128xbf16>
    %c0_11 = arith.constant 0 : index
    %c0_12 = arith.constant 0 : index
    %20 = vector.load %arg6[%c0_11, %c0_12] : memref<128x16xbf16, #tpu.memory_space<vmem>>, vector<128x16xbf16>
    %cst_13 = arith.constant dense<0.000000e+00> : vector<128x16xf32>
    %21 = tpu.matmul %19, %20, %cst_13 {dimension_numbers = #tpu.dot_dimension_numbers<[1], [0], [0], [1], [0, 0, 1, 1], [], []>} : vector<128x128xbf16>, vector<128x16xbf16>, vector<128x16xf32> -> vector<128x16xf32>
    %c0_14 = arith.constant 0 : index
    %c0_15 = arith.constant 0 : index
    %22 = vector.load %arg7[%c0_14, %c0_15] : memref<1x16xf32, #tpu.memory_space<vmem>>, vector<1x16xf32>
    %23 = vector.broadcast %22 : vector<1x16xf32> to vector<128x16xf32>
    %24 = arith.addf %21, %23 : vector<128x16xf32>
    %c0_16 = arith.constant 0 : index
    %c0_17 = arith.constant 0 : index
    %c0_18 = arith.constant 0 : index
    %25 = vector.load %arg5[%c0_16, %c0_17, %c0_18] : memref<1x128x16xf32, #tpu.memory_space<vmem>>, vector<1x128x16xf32>
    %26 = vector.shape_cast %25 : vector<1x128x16xf32> to vector<128x16xf32>
    %27 = arith.addf %24, %26 : vector<128x16xf32>
    %c0_19 = arith.constant 0 : index
    %c0_20 = arith.constant 0 : index
    %c0_21 = arith.constant 0 : index
    %28 = vector.load %arg8[%c0_19, %c0_20, %c0_21] : memref<1x128x16xf32, #tpu.memory_space<vmem>>, vector<1x128x16xf32>
    %29 = vector.shape_cast %28 : vector<1x128x16xf32> to vector<128x16xf32>
    %30 = vector.shape_cast %27 : vector<128x16xf32> to vector<1x128x16xf32>
    tpu.vector_store %arg8[%c0_19, %c0_20, %c0_21], %30 {strides = array<i32>} : memref<1x128x16xf32, #tpu.memory_space<vmem>>, vector<1x128x16xf32>,
    return
  }
  func.func @transform_0(%arg0: i32, %arg1: i32) -> (i32, i32, i32) {
    %c0_i32 = arith.constant 0 : i32
    %c0_i32_0 = arith.constant 0 : i32
    return %arg0, %arg1, %c0_i32 : i32, i32, i32
  }
  func.func @transform_1(%arg0: i32, %arg1: i32) -> (i32, i32, i32) {
    %c0_i32 = arith.constant 0 : i32
    %c0_i32_0 = arith.constant 0 : i32
    %c0_i32_1 = arith.constant 0 : i32
    return %arg0, %c0_i32, %c0_i32_0 : i32, i32, i32
  }
  func.func @transform_2(%arg0: i32, %arg1: i32) -> (i32, i32, i32) {
    %c0_i32 = arith.constant 0 : i32
    %c0_i32_0 = arith.constant 0 : i32
    %c0_i32_1 = arith.constant 0 : i32
    return %arg0, %c0_i32, %c0_i32_0 : i32, i32, i32
  }
  func.func @transform_3(%arg0: i32, %arg1: i32) -> (i32, i32, i32) {
    %c0_i32 = arith.constant 0 : i32
    %c0_i32_0 = arith.constant 0 : i32
    return %arg0, %arg1, %c0_i32 : i32, i32, i32
  }
  func.func @transform_4(%arg0: i32, %arg1: i32) -> (i32, i32) {
    %c0_i32 = arith.constant 0 : i32
    %c0_i32_0 = arith.constant 0 : i32
    %c0_i32_1 = arith.constant 0 : i32
    return %c0_i32, %c0_i32_0 : i32, i32
  }
  func.func @transform_5(%arg0: i32, %arg1: i32) -> (i32, i32) {
    %c0_i32 = arith.constant 0 : i32
    %c0_i32_0 = arith.constant 0 : i32
    %c0_i32_1 = arith.constant 0 : i32
    return %c0_i32, %c0_i32_0 : i32, i32
  }
  func.func @transform_6(%arg0: i32, %arg1: i32) -> (i32, i32, i32) {
    %c0_i32 = arith.constant 0 : i32
    %c0_i32_0 = arith.constant 0 : i32
    return %arg0, %arg1, %c0_i32 : i32, i32, i32
  }
}

</mosaic_0001>

<llo_original>
// kernel: nl3d_wrapper_forward.2
$region0: #{nl3d_wrapper_forward.2}
  #allocation0 [shape = 'u32[]', space=smem, size = 0x4, offset = 0x4, fixed_abs, tag = 'smem constant byte address 0x4 - core index']
  #allocation1 [shape = 'u32[144,128]{1,0:T(1,128)}', space=vmem, size = 0x12000, scoped, tag = 'internal scratch']
  %s0 = inlined_call_operand.vmem [shape: f32[2,4,64,16], index: 0, kind: input, shape index: {}]
  %s1 = inlined_call_operand.vmem [shape: bf16[16,384], index: 1, kind: input, shape index: {}]
  %s2 = inlined_call_operand.vmem [shape: f32[1,128], index: 2, kind: input, shape index: {}]
  %s3 = inlined_call_operand.vmem [shape: f32[1,256], index: 3, kind: input, shape index: {}]
  %s4 = inlined_call_operand.vmem [shape: bf16[2,4,64,128], index: 4, kind: output, shape index: {0}]
  %s5 = inlined_call_operand.vmem [shape: bf16[2,128,64], index: 5, kind: output, shape index: {1}]
  %s6 = inlined_call_operand.vmem [shape: bf16[2,64,128], index: 6, kind: output, shape index: {2}]
  %7 = xla_tuple %s4, %s5, %s6
  %s8 = sld [smem:[#allocation0]]
  $region65: #{nl3d_wrapper_forward.2} parent=0
    _
  %s10 = ssub.s32 1, %s8
  %s11 = scalar_select 0, %s10, %s8
  loop: start=0, step=1, limit=4
  $region2: #{nl3d_wrapper_forward.2} parent=0 // loop_pre_header
    _
  $region3: #{nl3d_wrapper_forward.2} parent=0 // loop_header
    %s13 = sphi 0, %s17
    %p14 = scmp.ge.s32.totalorder %s13, 4
    %s20 = sphi 0, %s32
    %s21 = sphi 0, %s28
    %s22 = sphi 0, %s20
    %s23 = sphi 0, %s21
    %s24 = sphi 0, %s22
    %s25 = sphi 0, %s23
    %s37 = sphi 0, %s39
    %s40 = sphi 0, %s37
    %s41 = sphi 0, %s40
    %s57 = sphi 0, %s41
    %s61 = sphi 0, %s61
    %s63 = sphi 0, %s61
    %s64 = sphi 0, %s63
    %s78 = sphi 0, %s64
    %s82 = sphi 0, %s82
    %s84 = sphi 0, %s82
    %s85 = sphi 0, %s84
    %s99 = sphi 0, %s85
    %s103 = sphi 0, %s103
    %s105 = sphi 0, %s103
    %s106 = sphi 0, %s105
    %s120 = sphi 0, %s106
    %s128 = sphi 0, %s130
    %s131 = sphi 0, %s128
    %s132 = sphi 0, %s131
    %s148 = sphi 0, %s132
    %s156 = sphi 0, %s158
    %s159 = sphi 0, %s156
    %s160 = sphi 0, %s159
    %s176 = sphi 0, %s160
    %s184 = sphi 0, %s186
    %s187 = sphi 0, %s184
    %s188 = sphi 0, %s187
    %s204 = sphi 0, %s188
  $region4: #{nl3d_wrapper_forward.2} parent=0 // loop_header_branch
    %16 = sbr.rel (%p14) target = $region8
  $region5: #{nl3d_wrapper_forward.2} parent=0 // loop_body
    %s18 = ssub.s32 %s13, 1
    %s19 = ssub.s32 %s13, 2
    %s26 = sadd.s32 1, %s21
    %p27 = scmp.ge.s32.totalorder %s26, 1
    %s28 = scalar_select %p27, 0, %s26
    %s29 = sadd.s32 1, %s20
    %s30 = scalar_select %p27, %s29, %s20
    %p31 = scmp.ge.s32.totalorder %s30, 2
    %s32 = scalar_select %p31, 0, %s30
    %s33 = ssub.s32 %s20, %s32
    %s34 = ssub.s32 %s21, %s28
    %s35 = sor.u32 %s33, %s34
    %p36 = scmp.eq.s32.totalorder %s35, 0
    %s38 = sadd.s32 %s37, 1
    %s39 = scalar_select %p36, %s37, %s38
    %p42 = pneg %p36
    %p43 = scmp.eq.s32.totalorder %s13, 1
    %p44 = por %p42, %p43
    %p45 = scmp.ne.s32.totalorder %s37, %s40
    %p46 = scmp.eq.s32.totalorder %s13, 0
    %p47 = por %p45, %p46
    %p48 = scmp.ne.s32.totalorder %s37, %s40
    %p49 = scmp.eq.s32.totalorder %s18, 1
    %p50 = por %p48, %p49
    %p51 = scmp.ne.s32.totalorder %s40, %s41
    %p52 = scmp.eq.s32.totalorder %s18, 0
    %p53 = por %p51, %p52
    %p54 = scmp.ne.s32.totalorder %s40, %s41
    %p55 = scmp.eq.s32.totalorder %s19, 1
    %p56 = por %p54, %p55
    %p58 = scmp.ne.s32.totalorder %s41, %s57
    %p59 = scmp.eq.s32.totalorder %s19, 0
    %p60 = por %p58, %p59
    %s62 = sadd.s32 %s61, 1
    %p65 = scmp.eq.s32.totalorder %s13, 1
    %p66 = scmp.ne.s32.totalorder %s61, %s63
    %p67 = scmp.eq.s32.totalorder %s13, 0
    %p68 = por %p66, %p67
    %p69 = scmp.ne.s32.totalorder %s61, %s63
    %p70 = scmp.eq.s32.totalorder %s18, 1
    %p71 = por %p69, %p70
    %p72 = scmp.ne.s32.totalorder %s63, %s64
    %p73 = scmp.eq.s32.totalorder %s18, 0
    %p74 = por %p72, %p73
    %p75 = scmp.ne.s32.totalorder %s63, %s64
    %p76 = scmp.eq.s32.totalorder %s19, 1
    %p77 = por %p75, %p76
    %p79 = scmp.ne.s32.totalorder %s64, %s78
    %p80 = scmp.eq.s32.totalorder %s19, 0
    %p81 = por %p79, %p80
    %s83 = sadd.s32 %s82, 1
    %p86 = scmp.eq.s32.totalorder %s13, 1
    %p87 = scmp.ne.s32.totalorder %s82, %s84
    %p88 = scmp.eq.s32.totalorder %s13, 0
    %p89 = por %p87, %p88
    %p90 = scmp.ne.s32.totalorder %s82, %s84
    %p91 = scmp.eq.s32.totalorder %s18, 1
    %p92 = por %p90, %p91
    %p93 = scmp.ne.s32.totalorder %s84, %s85
    %p94 = scmp.eq.s32.totalorder %s18, 0
    %p95 = por %p93, %p94
    %p96 = scmp.ne.s32.totalorder %s84, %s85
    %p97 = scmp.eq.s32.totalorder %s19, 1
    %p98 = por %p96, %p97
    %p100 = scmp.ne.s32.totalorder %s85, %s99
    %p101 = scmp.eq.s32.totalorder %s19, 0
    %p102 = por %p100, %p101
    %s104 = sadd.s32 %s103, 1
    %p107 = scmp.eq.s32.totalorder %s13, 1
    %p108 = scmp.ne.s32.totalorder %s103, %s105
    %p109 = scmp.eq.s32.totalorder %s13, 0
    %p110 = por %p108, %p109
    %p111 = scmp.ne.s32.totalorder %s103, %s105
    %p112 = scmp.eq.s32.totalorder %s18, 1
    %p113 = por %p111, %p112
    %p114 = scmp.ne.s32.totalorder %s105, %s106
    %p115 = scmp.eq.s32.totalorder %s18, 0
    %p116 = por %p114, %p115
    %p117 = scmp.ne.s32.totalorder %s105, %s106
    %p118 = scmp.eq.s32.totalorder %s19, 1
    %p119 = por %p117, %p118
    %p121 = scmp.ne.s32.totalorder %s106, %s120
    %p122 = scmp.eq.s32.totalorder %s19, 0
    %p123 = por %p121, %p122
    %s124 = ssub.s32 %s20, %s32
    %s125 = ssub.s32 %s21, %s28
    %s126 = sor.u32 %s124, %s125
    %p127 = scmp.eq.s32.totalorder %s126, 0
    %s129 = sadd.s32 %s128, 1
    %s130 = scalar_select %p127, %s128, %s129
    %p133 = pneg %p127
    %p134 = scmp.eq.s32.totalorder %s13, 1
    %p135 = por %p133, %p134
    %p136 = scmp.ne.s32.totalorder %s128, %s131
    %p137 = scmp.eq.s32.totalorder %s13, 0
    %p138 = por %p136, %p137
    %p139 = scmp.ne.s32.totalorder %s128, %s131
    %p140 = scmp.eq.s32.totalorder %s18, 1
    %p141 = por %p139, %p140
    %p142 = scmp.ne.s32.totalorder %s131, %s132
    %p143 = scmp.eq.s32.totalorder %s18, 0
    %p144 = por %p142, %p143
    %p145 = scmp.ne.s32.totalorder %s131, %s132
    %p146 = scmp.eq.s32.totalorder %s19, 1
    %p147 = por %p145, %p146
    %p149 = scmp.ne.s32.totalorder %s132, %s148
    %p150 = scmp.eq.s32.totalorder %s19, 0
    %p151 = por %p149, %p150
    %s152 = ssub.s32 %s20, %s32
    %s153 = ssub.s32 %s21, %s28
    %s154 = sor.u32 %s152, %s153
    %p155 = scmp.eq.s32.totalorder %s154, 0
    %s157 = sadd.s32 %s156, 1
    %s158 = scalar_select %p155, %s156, %s157
    %p161 = pneg %p155
    %p162 = scmp.eq.s32.totalorder %s13, 1
    %p163 = por %p161, %p162
    %p164 = scmp.ne.s32.totalorder %s156, %s159
    %p165 = scmp.eq.s32.totalorder %s13, 0
    %p166 = por %p164, %p165
    %p167 = scmp.ne.s32.totalorder %s156, %s159
    %p168 = scmp.eq.s32.totalorder %s18, 1
    %p169 = por %p167, %p168
    %p170 = scmp.ne.s32.totalorder %s159, %s160
    %p171 = scmp.eq.s32.totalorder %s18, 0
    %p172 = por %p170, %p171
    %p173 = scmp.ne.s32.totalorder %s159, %s160
    %p174 = scmp.eq.s32.totalorder %s19, 1
    %p175 = por %p173, %p174
    %p177 = scmp.ne.s32.totalorder %s160, %s176
    %p178 = scmp.eq.s32.totalorder %s19, 0
    %p179 = por %p177, %p178
    %s180 = ssub.s32 %s20, %s32
    %s181 = ssub.s32 %s21, %s28
    %s182 = sor.u32 %s180, %s181
    %p183 = scmp.eq.s32.totalorder %s182, 0
    %s185 = sadd.s32 %s184, 1
    %s186 = scalar_select %p183, %s184, %s185
    %p189 = pneg %p183
    %p190 = scmp.eq.s32.totalorder %s13, 1
    %p191 = por %p189, %p190
    %p192 = scmp.ne.s32.totalorder %s184, %s187
    %p193 = scmp.eq.s32.totalorder %s13, 0
    %p194 = por %p192, %p193
    %p195 = scmp.ne.s32.totalorder %s184, %s187
    %p196 = scmp.eq.s32.totalorder %s18, 1
    %p197 = por %p195, %p196
    %p198 = scmp.ne.s32.totalorder %s187, %s188
    %p199 = scmp.eq.s32.totalorder %s18, 0
    %p200 = por %p198, %p199
    %p201 = scmp.ne.s32.totalorder %s187, %s188
    %p202 = scmp.eq.s32.totalorder %s19, 1
    %p203 = por %p201, %p202
    %p205 = scmp.ne.s32.totalorder %s188, %s204
    %p206 = scmp.eq.s32.totalorder %s19, 0
    %p207 = por %p205, %p206
    %p208 = scmp.le.s32.totalorder 1, %s13
    %p209 = scmp.lt.s32.totalorder %s13, 3
    %p210 = pnand %p208, %p209
    %p211 = pneg %p210
    // Predicated region
    $region9: #{nl3d_wrapper_forward.2} parent=5 // pred_check
      _
    $region10: #{nl3d_wrapper_forward.2} parent=5 // pred_check_branch
      %213 = sbr.rel (%p210) target = $region12
    $region11: #{nl3d_wrapper_forward.2} parent=5 // pred_region
      %s214 = ssub.s32 %s13, 1
      // Predicated region
      $region13: #{nl3d_wrapper_forward.2} parent=11 // pred_check
        %p215 = pneg %p74
      $region14: #{nl3d_wrapper_forward.2} parent=11 // pred_check_branch
        %217 = sbr.rel (%p215) target = $region16
      $region15: #{nl3d_wrapper_forward.2} parent=11 // pred_region
        _
      $region16: #{nl3d_wrapper_forward.2} parent=11 // pred_fallthru
        _
      // Predicated region
      $region17: #{nl3d_wrapper_forward.2} parent=11 // pred_check
        %p218 = pneg %p95
      $region18: #{nl3d_wrapper_forward.2} parent=11 // pred_check_branch
        %220 = sbr.rel (%p218) target = $region20
      $region19: #{nl3d_wrapper_forward.2} parent=11 // pred_region
        _
      $region20: #{nl3d_wrapper_forward.2} parent=11 // pred_fallthru
        _
      // Predicated region
      $region21: #{nl3d_wrapper_forward.2} parent=11 // pred_check
        %p221 = pneg %p116
      $region22: #{nl3d_wrapper_forward.2} parent=11 // pred_check_branch
        %223 = sbr.rel (%p221) target = $region24
      $region23: #{nl3d_wrapper_forward.2} parent=11 // pred_region
        _
      $region24: #{nl3d_wrapper_forward.2} parent=11 // pred_fallthru
        _
    $region12: #{nl3d_wrapper_forward.2} parent=5 // pred_fallthru
      _
    %p224 = scmp.lt.s32.totalorder %s13, 2
    // Predicated region
    $region25: #{nl3d_wrapper_forward.2} parent=5 // pred_check
      %p225 = pneg %p224
    $region26: #{nl3d_wrapper_forward.2} parent=5 // pred_check_branch
      %227 = sbr.rel (%p225) target = $region28
    $region27: #{nl3d_wrapper_forward.2} parent=5 // pred_region
      // Predicated region
      $region29: #{nl3d_wrapper_forward.2} parent=27 // pred_check
        %p228 = pneg %p47
      $region30: #{nl3d_wrapper_forward.2} parent=27 // pred_check_branch
        %230 = sbr.rel (%p228) target = $region32
      $region31: #{nl3d_wrapper_forward.2} parent=27 // pred_region
        %s231 = smul.u32 8, %s21
        %p232 = scmp.lt.s32.totalorder %s20, 1
        %s233 = scalar_select %p232, %s20, 1
        %p234 = scmp.lt.s32.totalorder %s231, 7
        %s235 = scalar_select %p234, %s231, 7
        %s236 = smul.addr %s233, 32
        %s237 = sadd.s32 %s235, %s236
        %s238 = smul.addr %s237, 8
        %s239 = scalar_lea.vmem %s0, %s238
        %s240 = smul.u32 8, %s21
      $region32: #{nl3d_wrapper_forward.2} parent=27 // pred_fallthru
        _
    $region28: #{nl3d_wrapper_forward.2} parent=5 // pred_fallthru
      _
    %p241 = scmp.le.s32.totalorder 1, %s13
    %p242 = scmp.lt.s32.totalorder %s13, 3
    %p243 = pnand %p241, %p242
    %p244 = pneg %p243
    // Predicated region
    $region33: #{nl3d_wrapper_forward.2} parent=5 // pred_check
      _
    $region34: #{nl3d_wrapper_forward.2} parent=5 // pred_check_branch
      %246 = sbr.rel (%p243) target = $region36
    $region35: #{nl3d_wrapper_forward.2} parent=5 // pred_region
      %s247 = ssub.s32 %s13, 1
      %s248 = smul.u32 8, %s23
      %p249 = scmp.lt.s32.totalorder %s22, 1
      %s250 = scalar_select %p249, %s22, 1
      %p251 = scmp.lt.s32.totalorder %s248, 7
      %s252 = scalar_select %p251, %s248, 7
      %s253 = smul.addr %s250, 32
      %s254 = sadd.s32 %s252, %s253
      %s255 = smul.addr %s254, 8
      %s256 = scalar_lea.vmem %s0, %s255
      %p257 = pneg %p53
      %p258 = pneg %p50
      %p259 = pneg %p74
      %p260 = pneg %p71
      %p261 = pneg %p95
      %p262 = pneg %p92
      %p263 = pneg %p116
      %p264 = pneg %p113
      %p265 = pneg %p144
      %p266 = pneg %p141
      %s267 = smul.u32 8, %s23
      %p268 = scmp.lt.s32.totalorder %s22, 1
      %s269 = scalar_select %p268, %s22, 1
      %p270 = scmp.lt.s32.totalorder %s267, 7
      %s271 = scalar_select %p270, %s267, 7
      %s272 = smul.addr %s269, 32
      %s273 = sadd.s32 %s271, %s272
      %s274 = smul.addr %s273, 4
      %s275 = scalar_lea.vmem %s4, %s274
      %p276 = pneg %p172
      %p277 = pneg %p169
      %p278 = scmp.lt.s32.totalorder %s22, 1
      %s279 = scalar_select %p278, %s22, 1
      %p280 = scmp.lt.s32.totalorder %s23, 0
      %s281 = scalar_select %p280, %s23, 0
      %s282 = smul.addr %s279, 16
      %s283 = sadd.s32 %s281, %s282
      %s284 = smul.addr %s283, 4
      %s285 = scalar_lea.vmem %s5, %s284
      %p286 = pneg %p200
      %p287 = pneg %p197
      %s288 = smul.u32 8, %s23
      %p289 = scmp.lt.s32.totalorder %s22, 1
      %s290 = scalar_select %p289, %s22, 1
      %p291 = scmp.lt.s32.totalorder %s288, 7
      %s292 = scalar_select %p291, %s288, 7
      %s293 = smul.addr %s290, 8
      %s294 = sadd.s32 %s292, %s293
      %s295 = smul.addr %s294, 4
      %s296 = scalar_lea.vmem %s6, %s295
      %s297 = smul.u32 8, %s23
      %p298 = scmp.lt.s32.totalorder %s22, 1
      %s299 = scalar_select %p298, %s22, 1
      %p300 = scmp.lt.s32.totalorder %s297, 7
      %s301 = scalar_select %p300, %s297, 7
      %s302 = smul.addr %s299, 32
      %s303 = sadd.s32 %s301, %s302
      %s304 = smul.addr %s303, 8
      %s305 = scalar_lea.vmem %s0, %s304
      %s306 = smul.u32 8, %s23
      %s307 = smul.u32 8, %s23
      %p308 = scmp.lt.s32.totalorder %s22, 1
      %s309 = scalar_select %p308, %s22, 1
      %p310 = scmp.lt.s32.totalorder %s307, 7
      %s311 = scalar_select %p310, %s307, 7
      %s312 = smul.addr %s309, 32
      %s313 = sadd.s32 %s311, %s312
      %s314 = smul.addr %s313, 4
      %s315 = scalar_lea.vmem %s4, %s314
      %s316 = smul.u32 8, %s23
      %p317 = scmp.lt.s32.totalorder %s22, 1
      %s318 = scalar_select %p317, %s22, 1
      %p319 = scmp.lt.s32.totalorder %s23, 0
      %s320 = scalar_select %p319, %s23, 0
      %s321 = smul.addr %s318, 16
      %s322 = sadd.s32 %s320, %s321
      %s323 = smul.addr %s322, 4
      %s324 = scalar_lea.vmem %s5, %s323
      %s325 = smul.u32 8, %s23
      %p326 = scmp.lt.s32.totalorder %s22, 1
      %s327 = scalar_select %p326, %s22, 1
      %p328 = scmp.lt.s32.totalorder %s325, 7
      %s329 = scalar_select %p328, %s325, 7
      %s330 = smul.addr %s327, 8
      %s331 = sadd.s32 %s329, %s330
      %s332 = smul.addr %s331, 4
      %s333 = scalar_lea.vmem %s6, %s332
      %s334 = smul.u32 8, %s23
      %v336 = vld [vmem:[%s305] sm:$0xff]
      %v337 = vld [vmem:[%s305 + $0x8] sm:$0xff]
      %v338 = vld [vmem:[%s305 + $0x10] sm:$0xff]
      %v339 = vld [vmem:[%s305 + $0x18] sm:$0xff]
      %v340 = vld [vmem:[%s305 + $0x20] sm:$0xff]
      %v341 = vld [vmem:[%s305 + $0x28] sm:$0xff]
      %v342 = vld [vmem:[%s305 + $0x30] sm:$0xff]
      %v343 = vld [vmem:[%s305 + $0x38] sm:$0xff]
      %v344 = vld [vmem:[%s305 + $0x40] sm:$0xff]
      %v345 = vld [vmem:[%s305 + $0x48] sm:$0xff]
      %v346 = vld [vmem:[%s305 + $0x50] sm:$0xff]
      %v347 = vld [vmem:[%s305 + $0x58] sm:$0xff]
      %v348 = vld [vmem:[%s305 + $0x60] sm:$0xff]
      %v349 = vld [vmem:[%s305 + $0x68] sm:$0xff]
      %v350 = vld [vmem:[%s305 + $0x70] sm:$0xff]
      %v351 = vld [vmem:[%s305 + $0x78] sm:$0xff]
      %v352 = vld [vmem:[%s305 + $0x80] sm:$0xff]
      %v353 = vld [vmem:[%s305 + $0x88] sm:$0xff]
      %v354 = vld [vmem:[%s305 + $0x90] sm:$0xff]
      %v355 = vld [vmem:[%s305 + $0x98] sm:$0xff]
      %v356 = vld [vmem:[%s305 + $0xa0] sm:$0xff]
      %v357 = vld [vmem:[%s305 + $0xa8] sm:$0xff]
      %v358 = vld [vmem:[%s305 + $0xb0] sm:$0xff]
      %v359 = vld [vmem:[%s305 + $0xb8] sm:$0xff]
      %v360 = vld [vmem:[%s305 + $0xc0] sm:$0xff]
      %v361 = vld [vmem:[%s305 + $0xc8] sm:$0xff]
      %v362 = vld [vmem:[%s305 + $0xd0] sm:$0xff]
      %v363 = vld [vmem:[%s305 + $0xd8] sm:$0xff]
      %v364 = vld [vmem:[%s305 + $0xe0] sm:$0xff]
      %v365 = vld [vmem:[%s305 + $0xe8] sm:$0xff]
      %v366 = vld [vmem:[%s305 + $0xf0] sm:$0xff]
      %v367 = vld [vmem:[%s305 + $0xf8] sm:$0xff]
      %v368 = vpack.c.bf16 %v337, %v336
      %v369 = vpack.c.bf16 %v339, %v338
      %v370 = vpack.c.bf16 %v341, %v340
      %v371 = vpack.c.bf16 %v343, %v342
      %v372 = vpack.c.bf16 %v345, %v344
      %v373 = vpack.c.bf16 %v347, %v346
      %v374 = vpack.c.bf16 %v349, %v348
      %v375 = vpack.c.bf16 %v351, %v350
      %v376 = vpack.c.bf16 %v353, %v352
      %v377 = vpack.c.bf16 %v355, %v354
      %v378 = vpack.c.bf16 %v357, %v356
      %v379 = vpack.c.bf16 %v359, %v358
      %v380 = vpack.c.bf16 %v361, %v360
      %v381 = vpack.c.bf16 %v363, %v362
      %v382 = vpack.c.bf16 %v365, %v364
      %v383 = vpack.c.bf16 %v367, %v366
      %v384 = vld [vmem:[%s1] sm:$0xff]
      %v385 = vld [vmem:[%s1 + $0x8] sm:$0xf]
      %v386 = vld [vmem:[%s1 + $0xc] sm:$0xff]
      %v387 = vld [vmem:[%s1 + $0x14] sm:$0xf]
      %v392 = vunpack.c.l.b16 %v384
      %v393 = vunpack.c.h.b16 %v384
      %v394 = vunpack.c.l.b16 %v385
      %v395 = vunpack.c.l.b16 %v386
      %v396 = vunpack.c.h.b16 %v386
      %v397 = vunpack.c.l.b16 %v387
      %v398 = vpack.c.b16 %v395, %v392
      %v399 = vpack.c.b16 %v396, %v393
      %v400 = vpack.c.b16 %v397, %v394
      %vm404 = vcmask 130048
      %v406 = vsel %vm404, %v368, 0
      %v409 = vsel %vm404, %v369, 0
      %v412 = vsel %vm404, %v370, 0
      %v415 = vsel %vm404, %v371, 0
      %v418 = vsel %vm404, %v372, 0
      %v421 = vsel %vm404, %v373, 0
      %v424 = vsel %vm404, %v374, 0
      %v427 = vsel %vm404, %v375, 0
      %v430 = vsel %vm404, %v376, 0
      %v433 = vsel %vm404, %v377, 0
      %v436 = vsel %vm404, %v378, 0
      %v439 = vsel %vm404, %v379, 0
      %v442 = vsel %vm404, %v380, 0
      %v445 = vsel %vm404, %v381, 0
      %v448 = vsel %vm404, %v382, 0
      %v451 = vsel %vm404, %v383, 0
      %453 = vmatprep.subr.bf16.mxu0 %v399
      %454 = vmatpush1.bf16.msra.mxu0 %v398
      %455 = vmatprep.subr.bf16.mxu0 0
      %456 = vmatpush1.bf16.msra.mxu0 0
      %457 = vmatprep.subr.bf16.mxu0 0
      %458 = vmatpush1.bf16.msra.mxu0 0
      %459 = vmatprep.subr.bf16.mxu0 0
      %460 = vmatpush1.bf16.msra.mxu0 0
      %461 = vmatprep.subr.bf16.mxu0 0
      %462 = vmatpush1.bf16.msra.mxu0 0
      %463 = vmatprep.subr.bf16.mxu0 0
      %464 = vmatpush1.bf16.msra.mxu0 0
      %465 = vmatprep.subr.bf16.mxu0 0
      %466 = vmatpush1.bf16.msra.mxu0 0
      %467 = vmatprep.subr.bf16.mxu0 0
      %468 = vmatpush1.bf16.msra.mxu0 0
      %469 = vmatprep.subr.bf16.mxu0 0
      %470 = vmatpush1.bf16.msra.mxu0 0
      %471 = vmatprep.subr.bf16.mxu0 0
      %472 = vmatpush1.bf16.msra.mxu0 0
      %473 = vmatprep.subr.bf16.mxu0 0
      %474 = vmatpush1.bf16.msra.mxu0 0
      %475 = vmatprep.subr.bf16.mxu0 0
      %476 = vmatpush1.bf16.msra.mxu0 0
      %477 = vmatprep.subr.bf16.mxu0 0
      %478 = vmatpush1.bf16.msra.mxu0 0
      %479 = vmatprep.subr.bf16.mxu0 0
      %480 = vmatpush1.bf16.msra.mxu0 0
      %481 = vmatprep.subr.bf16.mxu0 0
      %482 = vmatpush1.bf16.msra.mxu0 0
      %483 = vmatprep.subr.bf16.mxu0 0
      %484 = vmatpush1.bf16.msra.mxu0 0
      %485 = vmatprep.mubr.bf16.mxu0 0
      %486 = vmatmul.mubr.bf16.gmra.mrb[0].mxu0 %v406
      %v487 = vpop.f32.mrb[0].mxu0
      %v488 = vadd.f32 0.0, %v487
      %v489 = vpop.f32.mrb[0].mxu0
      %v490 = vadd.f32 0.0, %v489
      %v491 = vpop.f32.mrb[0].mxu0
      %v492 = vadd.f32 0.0, %v491
      %v493 = vpop.f32.mrb[0].mxu0
      %v494 = vadd.f32 0.0, %v493
      %495 = vmatprep.mubr.bf16.mxu0 0
      %496 = vmatmul.mubr.bf16.gmra.mrb[0].mxu0 %v409
      %v497 = vpop.f32.mrb[0].mxu0
      %v498 = vadd.f32 0.0, %v497
      %v499 = vpop.f32.mrb[0].mxu0
      %v500 = vadd.f32 0.0, %v499
      %v501 = vpop.f32.mrb[0].mxu0
      %v502 = vadd.f32 0.0, %v501
      %v503 = vpop.f32.mrb[0].mxu0
      %v504 = vadd.f32 0.0, %v503
      %505 = vmatprep.mubr.bf16.mxu0 0
      %506 = vmatmul.mubr.bf16.gmra.mrb[0].mxu0 %v412
      %v507 = vpop.f32.mrb[0].mxu0
      %v508 = vadd.f32 0.0, %v507
      %v509 = vpop.f32.mrb[0].mxu0
      %v510 = vadd.f32 0.0, %v509
      %v511 = vpop.f32.mrb[0].mxu0
      %v512 = vadd.f32 0.0, %v511
      %v513 = vpop.f32.mrb[0].mxu0
      %v514 = vadd.f32 0.0, %v513
      %515 = vmatprep.mubr.bf16.mxu0 0
      %516 = vmatmul.mubr.bf16.gmra.mrb[0].mxu0 %v415
      %v517 = vpop.f32.mrb[0].mxu0
      %v518 = vadd.f32 0.0, %v517
      %v519 = vpop.f32.mrb[0].mxu0
      %v520 = vadd.f32 0.0, %v519
      %v521 = vpop.f32.mrb[0].mxu0
      %v522 = vadd.f32 0.0, %v521
      %v523 = vpop.f32.mrb[0].mxu0
      %v524 = vadd.f32 0.0, %v523
      %525 = vmatprep.mubr.bf16.mxu0 0
      %526 = vmatmul.mubr.bf16.gmra.mrb[0].mxu0 %v418
      %v527 = vpop.f32.mrb[0].mxu0
      %v528 = vadd.f32 0.0, %v527
      %v529 = vpop.f32.mrb[0].mxu0
      %v530 = vadd.f32 0.0, %v529
      %v531 = vpop.f32.mrb[0].mxu0
      %v532 = vadd.f32 0.0, %v531
      %v533 = vpop.f32.mrb[0].mxu0
      %v534 = vadd.f32 0.0, %v533
      %535 = vmatprep.mubr.bf16.mxu0 0
      %536 = vmatmul.mubr.bf16.gmra.mrb[0].mxu0 %v421
      %v537 = vpop.f32.mrb[0].mxu0
      %v538 = vadd.f32 0.0, %v537
      %v539 = vpop.f32.mrb[0].mxu0
      %v540 = vadd.f32 0.0, %v539
      %v541 = vpop.f32.mrb[0].mxu0
      %v542 = vadd.f32 0.0, %v541
      %v543 = vpop.f32.mrb[0].mxu0
      %v544 = vadd.f32 0.0, %v543
      %545 = vmatprep.mubr.bf16.mxu0 0
      %546 = vmatmul.mubr.bf16.gmra.mrb[0].mxu0 %v424
      %v547 = vpop.f32.mrb[0].mxu0
      %v548 = vadd.f32 0.0, %v547
      %v549 = vpop.f32.mrb[0].mxu0
      %v550 = vadd.f32 0.0, %v549
      %v551 = vpop.f32.mrb[0].mxu0
      %v552 = vadd.f32 0.0, %v551
      %v553 = vpop.f32.mrb[0].mxu0
      %v554 = vadd.f32 0.0, %v553
      %555 = vmatprep.mubr.bf16.mxu0 0
      %556 = vmatmul.mubr.bf16.gmra.mrb[0].mxu0 %v427
      %v557 = vpop.f32.mrb[0].mxu0
      %v558 = vadd.f32 0.0, %v557
      %v559 = vpop.f32.mrb[0].mxu0
      %v560 = vadd.f32 0.0, %v559
      %v561 = vpop.f32.mrb[0].mxu0
      %v562 = vadd.f32 0.0, %v561
      %v563 = vpop.f32.mrb[0].mxu0
      %v564 = vadd.f32 0.0, %v563
      %565 = vmatprep.mubr.bf16.mxu0 0
      %566 = vmatmul.mubr.bf16.gmra.mrb[0].mxu0 %v430
      %v567 = vpop.f32.mrb[0].mxu0
      %v568 = vadd.f32 0.0, %v567
      %v569 = vpop.f32.mrb[0].mxu0
      %v570 = vadd.f32 0.0, %v569
      %v571 = vpop.f32.mrb[0].mxu0
      %v572 = vadd.f32 0.0, %v571
      %v573 = vpop.f32.mrb[0].mxu0
      %v574 = vadd.f32 0.0, %v573
      %575 = vmatprep.mubr.bf16.mxu0 0
      %576 = vmatmul.mubr.bf16.gmra.mrb[0].mxu0 %v433
      %v577 = vpop.f32.mrb[0].mxu0
      %v578 = vadd.f32 0.0, %v577
      %v579 = vpop.f32.mrb[0].mxu0
      %v580 = vadd.f32 0.0, %v579
      %v581 = vpop.f32.mrb[0].mxu0
      %v582 = vadd.f32 0.0, %v581
      %v583 = vpop.f32.mrb[0].mxu0
      %v584 = vadd.f32 0.0, %v583
      %585 = vmatprep.mubr.bf16.mxu0 0
      %586 = vmatmul.mubr.bf16.gmra.mrb[0].mxu0 %v436
      %v587 = vpop.f32.mrb[0].mxu0
      %v588 = vadd.f32 0.0, %v587
      %v589 = vpop.f32.mrb[0].mxu0
      %v590 = vadd.f32 0.0, %v589
      %v591 = vpop.f32.mrb[0].mxu0
      %v592 = vadd.f32 0.0, %v591
      %v593 = vpop.f32.mrb[0].mxu0
      %v594 = vadd.f32 0.0, %v593
      %595 = vmatprep.mubr.bf16.mxu0 0
      %596 = vmatmul.mubr.bf16.gmra.mrb[0].mxu0 %v439
      %v597 = vpop.f32.mrb[0].mxu0
      %v598 = vadd.f32 0.0, %v597
      %v599 = vpop.f32.mrb[0].mxu0
      %v600 = vadd.f32 0.0, %v599
      %v601 = vpop.f32.mrb[0].mxu0
      %v602 = vadd.f32 0.0, %v601
      %v603 = vpop.f32.mrb[0].mxu0
      %v604 = vadd.f32 0.0, %v603
      %605 = vmatprep.mubr.bf16.mxu0 0
      %606 = vmatmul.mubr.bf16.gmra.mrb[0].mxu0 %v442
      %v607 = vpop.f32.mrb[0].mxu0
      %v608 = vadd.f32 0.0, %v607
      %v609 = vpop.f32.mrb[0].mxu0
      %v610 = vadd.f32 0.0, %v609
      %v611 = vpop.f32.mrb[0].mxu0
      %v612 = vadd.f32 0.0, %v611
      %v613 = vpop.f32.mrb[0].mxu0
      %v614 = vadd.f32 0.0, %v613
      %615 = vmatprep.mubr.bf16.mxu0 0
      %616 = vmatmul.mubr.bf16.gmra.mrb[0].mxu0 %v445
      %v617 = vpop.f32.mrb[0].mxu0
      %v618 = vadd.f32 0.0, %v617
      %v619 = vpop.f32.mrb[0].mxu0
      %v620 = vadd.f32 0.0, %v619
      %v621 = vpop.f32.mrb[0].mxu0
      %v622 = vadd.f32 0.0, %v621
      %v623 = vpop.f32.mrb[0].mxu0
      %v624 = vadd.f32 0.0, %v623
      %625 = vmatprep.mubr.bf16.mxu0 0
      %626 = vmatmul.mubr.bf16.gmra.mrb[0].mxu0 %v448
      %v627 = vpop.f32.mrb[0].mxu0
      %v628 = vadd.f32 0.0, %v627
      %v629 = vpop.f32.mrb[0].mxu0
      %v630 = vadd.f32 0.0, %v629
      %v631 = vpop.f32.mrb[0].mxu0
      %v632 = vadd.f32 0.0, %v631
      %v633 = vpop.f32.mrb[0].mxu0
      %v634 = vadd.f32 0.0, %v633
      %635 = vmatprep.mubr.bf16.mxu0 0
      %636 = vmatmul.mubr.bf16.gmra.mrb[0].mxu0 %v451
      %v637 = vpop.f32.mrb[0].mxu0
      %v638 = vadd.f32 0.0, %v637
      %v639 = vpop.f32.mrb[0].mxu0
      %v640 = vadd.f32 0.0, %v639
      %v641 = vpop.f32.mrb[0].mxu0
      %v642 = vadd.f32 0.0, %v641
      %v643 = vpop.f32.mrb[0].mxu0
      %v644 = vadd.f32 0.0, %v643
      %645 = vdwg.mxu0
      %646 = vmatprep.subr.bf16.mxu0 0
      %647 = vmatpush1.bf16.msra.mxu0 %v400
      %648 = vmatprep.subr.bf16.mxu0 0
      %649 = vmatpush1.bf16.msra.mxu0 0
      %650 = vmatprep.subr.bf16.mxu0 0
      %651 = vmatpush1.bf16.msra.mxu0 0
      %652 = vmatprep.subr.bf16.mxu0 0
      %653 = vmatpush1.bf16.msra.mxu0 0
      %654 = vmatprep.subr.bf16.mxu0 0
      %655 = vmatpush1.bf16.msra.mxu0 0
      %656 = vmatprep.subr.bf16.mxu0 0
      %657 = vmatpush1.bf16.msra.mxu0 0
      %658 = vmatprep.subr.bf16.mxu0 0
      %659 = vmatpush1.bf16.msra.mxu0 0
      %660 = vmatprep.subr.bf16.mxu0 0
      %661 = vmatpush1.bf16.msra.mxu0 0
      %662 = vmatprep.subr.bf16.mxu0 0
      %663 = vmatpush1.bf16.msra.mxu0 0
      %664 = vmatprep.subr.bf16.mxu0 0
      %665 = vmatpush1.bf16.msra.mxu0 0
      %666 = vmatprep.subr.bf16.mxu0 0
      %667 = vmatpush1.bf16.msra.mxu0 0
      %668 = vmatprep.subr.bf16.mxu0 0
      %669 = vmatpush1.bf16.msra.mxu0 0
      %670 = vmatprep.subr.bf16.mxu0 0
      %671 = vmatpush1.bf16.msra.mxu0 0
      %672 = vmatprep.subr.bf16.mxu0 0
      %673 = vmatpush1.bf16.msra.mxu0 0
      %674 = vmatprep.subr.bf16.mxu0 0
      %675 = vmatpush1.bf16.msra.mxu0 0
      %676 = vmatprep.subr.bf16.mxu0 0
      %677 = vmatpush1.bf16.msra.mxu0 0
      %678 = vmatprep.mubr.bf16.mxu0 0
      %679 = vmatmul.mubr.bf16.gmra.mrb[0].mxu0 %v406
      %v680 = vpop.f32.mrb[0].mxu0
      %v681 = vadd.f32 0.0, %v680
      %v682 = vpop.f32.mrb[0].mxu0
      %v683 = vpop.f32.mrb[0].mxu0
      %v684 = vadd.f32 0.0, %v683
      %v685 = vpop.f32.mrb[0].mxu0
      %686 = vmatprep.mubr.bf16.mxu0 0
      %687 = vmatmul.mubr.bf16.gmra.mrb[0].mxu0 %v409
      %v688 = vpop.f32.mrb[0].mxu0
      %v689 = vadd.f32 0.0, %v688
      %v690 = vpop.f32.mrb[0].mxu0
      %v691 = vpop.f32.mrb[0].mxu0
      %v692 = vadd.f32 0.0, %v691
      %v693 = vpop.f32.mrb[0].mxu0
      %694 = vmatprep.mubr.bf16.mxu0 0
      %695 = vmatmul.mubr.bf16.gmra.mrb[0].mxu0 %v412
      %v696 = vpop.f32.mrb[0].mxu0
      %v697 = vadd.f32 0.0, %v696
      %v698 = vpop.f32.mrb[0].mxu0
      %v699 = vpop.f32.mrb[0].mxu0
      %v700 = vadd.f32 0.0, %v699
      %v701 = vpop.f32.mrb[0].mxu0
      %702 = vmatprep.mubr.bf16.mxu0 0
      %703 = vmatmul.mubr.bf16.gmra.mrb[0].mxu0 %v415
      %v704 = vpop.f32.mrb[0].mxu0
      %v705 = vadd.f32 0.0, %v704
      %v706 = vpop.f32.mrb[0].mxu0
      %v707 = vpop.f32.mrb[0].mxu0
      %v708 = vadd.f32 0.0, %v707
      %v709 = vpop.f32.mrb[0].mxu0
      %710 = vmatprep.mubr.bf16.mxu0 0
      %711 = vmatmul.mubr.bf16.gmra.mrb[0].mxu0 %v418
      %v712 = vpop.f32.mrb[0].mxu0
      %v713 = vadd.f32 0.0, %v712
      %v714 = vpop.f32.mrb[0].mxu0
      %v715 = vpop.f32.mrb[0].mxu0
      %v716 = vadd.f32 0.0, %v715
      %v717 = vpop.f32.mrb[0].mxu0
      %718 = vmatprep.mubr.bf16.mxu0 0
      %719 = vmatmul.mubr.bf16.gmra.mrb[0].mxu0 %v421
      %v720 = vpop.f32.mrb[0].mxu0
      %v721 = vadd.f32 0.0, %v720
      %v722 = vpop.f32.mrb[0].mxu0
      %v723 = vpop.f32.mrb[0].mxu0
      %v724 = vadd.f32 0.0, %v723
      %v725 = vpop.f32.mrb[0].mxu0
      %726 = vmatprep.mubr.bf16.mxu0 0
      %727 = vmatmul.mubr.bf16.gmra.mrb[0].mxu0 %v424
      %v728 = vpop.f32.mrb[0].mxu0
      %v729 = vadd.f32 0.0, %v728
      %v730 = vpop.f32.mrb[0].mxu0
      %v731 = vpop.f32.mrb[0].mxu0
      %v732 = vadd.f32 0.0, %v731
      %v733 = vpop.f32.mrb[0].mxu0
      %734 = vmatprep.mubr.bf16.mxu0 0
      %735 = vmatmul.mubr.bf16.gmra.mrb[0].mxu0 %v427
      %v736 = vpop.f32.mrb[0].mxu0
      %v737 = vadd.f32 0.0, %v736
      %v738 = vpop.f32.mrb[0].mxu0
      %v739 = vpop.f32.mrb[0].mxu0
      %v740 = vadd.f32 0.0, %v739
      %v741 = vpop.f32.mrb[0].mxu0
      %742 = vmatprep.mubr.bf16.mxu0 0
      %743 = vmatmul.mubr.bf16.gmra.mrb[0].mxu0 %v430
      %v744 = vpop.f32.mrb[0].mxu0
      %v745 = vadd.f32 0.0, %v744
      %v746 = vpop.f32.mrb[0].mxu0
      %v747 = vpop.f32.mrb[0].mxu0
      %v748 = vadd.f32 0.0, %v747
      %v749 = vpop.f32.mrb[0].mxu0
      %750 = vmatprep.mubr.bf16.mxu0 0
      %751 = vmatmul.mubr.bf16.gmra.mrb[0].mxu0 %v433
      %v752 = vpop.f32.mrb[0].mxu0
      %v753 = vadd.f32 0.0, %v752
      %v754 = vpop.f32.mrb[0].mxu0
      %v755 = vpop.f32.mrb[0].mxu0
      %v756 = vadd.f32 0.0, %v755
      %v757 = vpop.f32.mrb[0].mxu0
      %758 = vmatprep.mubr.bf16.mxu0 0
      %759 = vmatmul.mubr.bf16.gmra.mrb[0].mxu0 %v436
      %v760 = vpop.f32.mrb[0].mxu0
      %v761 = vadd.f32 0.0, %v760
      %v762 = vpop.f32.mrb[0].mxu0
      %v763 = vpop.f32.mrb[0].mxu0
      %v764 = vadd.f32 0.0, %v763
      %v765 = vpop.f32.mrb[0].mxu0
      %766 = vmatprep.mubr.bf16.mxu0 0
      %767 = vmatmul.mubr.bf16.gmra.mrb[0].mxu0 %v439
      %v768 = vpop.f32.mrb[0].mxu0
      %v769 = vadd.f32 0.0, %v768
      %v770 = vpop.f32.mrb[0].mxu0
      %v771 = vpop.f32.mrb[0].mxu0
      %v772 = vadd.f32 0.0, %v771
      %v773 = vpop.f32.mrb[0].mxu0
      %774 = vmatprep.mubr.bf16.mxu0 0
      %775 = vmatmul.mubr.bf16.gmra.mrb[0].mxu0 %v442
      %v776 = vpop.f32.mrb[0].mxu0
      %v777 = vadd.f32 0.0, %v776
      %v778 = vpop.f32.mrb[0].mxu0
      %v779 = vpop.f32.mrb[0].mxu0
      %v780 = vadd.f32 0.0, %v779
      %v781 = vpop.f32.mrb[0].mxu0
      %782 = vmatprep.mubr.bf16.mxu0 0
      %783 = vmatmul.mubr.bf16.gmra.mrb[0].mxu0 %v445
      %v784 = vpop.f32.mrb[0].mxu0
      %v785 = vadd.f32 0.0, %v784
      %v786 = vpop.f32.mrb[0].mxu0
      %v787 = vpop.f32.mrb[0].mxu0
      %v788 = vadd.f32 0.0, %v787
      %v789 = vpop.f32.mrb[0].mxu0
      %790 = vmatprep.mubr.bf16.mxu0 0
      %791 = vmatmul.mubr.bf16.gmra.mrb[0].mxu0 %v448
      %v792 = vpop.f32.mrb[0].mxu0
      %v793 = vadd.f32 0.0, %v792
      %v794 = vpop.f32.mrb[0].mxu0
      %v795 = vpop.f32.mrb[0].mxu0
      %v796 = vadd.f32 0.0, %v795
      %v797 = vpop.f32.mrb[0].mxu0
      %798 = vmatprep.mubr.bf16.mxu0 0
      %799 = vmatmul.mubr.bf16.gmra.mrb[0].mxu0 %v451
      %v800 = vpop.f32.mrb[0].mxu0
      %v801 = vadd.f32 0.0, %v800
      %v802 = vpop.f32.mrb[0].mxu0
      %v803 = vpop.f32.mrb[0].mxu0
      %v804 = vadd.f32 0.0, %v803
      %v805 = vpop.f32.mrb[0].mxu0
      %806 = vdwg.mxu0
      %v807 = vld [vmem:[%s2] sm:$0x1]
      %v809 = vlaneseq
      %v810 = vshrl.u32 %v809, 7
      %v811 = vsub.s32 0, %v810
      %v812 = vrot.slane %v807, %v811
      %v814 = vadd.f32 %v488, %v812
      %v815 = vadd.f32 %v492, %v812
      %v816 = vadd.f32 %v498, %v812
      %v817 = vadd.f32 %v502, %v812
      %v818 = vadd.f32 %v508, %v812
      %v819 = vadd.f32 %v512, %v812
      %v820 = vadd.f32 %v518, %v812
      %v821 = vadd.f32 %v522, %v812
      %v822 = vadd.f32 %v528, %v812
      %v823 = vadd.f32 %v532, %v812
      %v824 = vadd.f32 %v538, %v812
      %v825 = vadd.f32 %v542, %v812
      %v826 = vadd.f32 %v548, %v812
      %v827 = vadd.f32 %v552, %v812
      %v828 = vadd.f32 %v558, %v812
      %v829 = vadd.f32 %v562, %v812
      %v830 = vadd.f32 %v568, %v812
      %v831 = vadd.f32 %v572, %v812
      %v832 = vadd.f32 %v578, %v812
      %v833 = vadd.f32 %v582, %v812
      %v834 = vadd.f32 %v588, %v812
      %v835 = vadd.f32 %v592, %v812
      %v836 = vadd.f32 %v598, %v812
      %v837 = vadd.f32 %v602, %v812
      %v838 = vadd.f32 %v608, %v812
      %v839 = vadd.f32 %v612, %v812
      %v840 = vadd.f32 %v618, %v812
      %v841 = vadd.f32 %v622, %v812
      %v842 = vadd.f32 %v628, %v812
      %v843 = vadd.f32 %v632, %v812
      %v844 = vadd.f32 %v638, %v812
      %v845 = vadd.f32 %v642, %v812
      %v846 = vpack.c.bf16 %v815, %v814
      %v847 = vpack.c.bf16 %v817, %v816
      %v848 = vpack.c.bf16 %v819, %v818
      %v849 = vpack.c.bf16 %v821, %v820
      %v850 = vpack.c.bf16 %v823, %v822
      %v851 = vpack.c.bf16 %v825, %v824
      %v852 = vpack.c.bf16 %v827, %v826
      %v853 = vpack.c.bf16 %v829, %v828
      %v854 = vpack.c.bf16 %v831, %v830
      %v855 = vpack.c.bf16 %v833, %v832
      %v856 = vpack.c.bf16 %v835, %v834
      %v857 = vpack.c.bf16 %v837, %v836
      %v858 = vpack.c.bf16 %v839, %v838
      %v859 = vpack.c.bf16 %v841, %v840
      %v860 = vpack.c.bf16 %v843, %v842
      %v861 = vpack.c.bf16 %v845, %v844
      %v878 = vunpack.c.l.b16 %v846
      %v879 = vunpack.c.h.b16 %v846
      %v880 = vunpack.c.l.b16 %v847
      %v881 = vunpack.c.h.b16 %v847
      %v882 = vunpack.c.l.b16 %v848
      %v883 = vunpack.c.h.b16 %v848
      %v884 = vunpack.c.l.b16 %v849
      %v885 = vunpack.c.h.b16 %v849
      %v886 = vunpack.c.l.b16 %v850
      %v887 = vunpack.c.h.b16 %v850
      %v888 = vunpack.c.l.b16 %v851
      %v889 = vunpack.c.h.b16 %v851
      %v890 = vunpack.c.l.b16 %v852
      %v891 = vunpack.c.h.b16 %v852
      %v892 = vunpack.c.l.b16 %v853
      %v893 = vunpack.c.h.b16 %v853
      %v894 = vunpack.c.l.b16 %v854
      %v895 = vunpack.c.h.b16 %v854
      %v896 = vunpack.c.l.b16 %v855
      %v897 = vunpack.c.h.b16 %v855
      %v898 = vunpack.c.l.b16 %v856
      %v899 = vunpack.c.h.b16 %v856
      %v900 = vunpack.c.l.b16 %v857
      %v901 = vunpack.c.h.b16 %v857
      %v902 = vunpack.c.l.b16 %v858
      %v903 = vunpack.c.h.b16 %v858
      %v904 = vunpack.c.l.b16 %v859
      %v905 = vunpack.c.h.b16 %v859
      %v906 = vunpack.c.l.b16 %v860
      %v907 = vunpack.c.h.b16 %v860
      %v908 = vunpack.c.l.b16 %v861
      %v909 = vunpack.c.h.b16 %v861
      %v910 = vpack.c.b16 %v878, %v878
      %v911 = vpack.c.b16 %v879, %v879
      %v912 = vpack.c.b16 %v880, %v880
      %v913 = vpack.c.b16 %v881, %v881
      %v914 = vpack.c.b16 %v882, %v882
      %v915 = vpack.c.b16 %v883, %v883
      %v916 = vpack.c.b16 %v884, %v884
      %v917 = vpack.c.b16 %v885, %v885
      %v918 = vpack.c.b16 %v886, %v886
      %v919 = vpack.c.b16 %v887, %v887
      %v920 = vpack.c.b16 %v888, %v888
      %v921 = vpack.c.b16 %v889, %v889
      %v922 = vpack.c.b16 %v890, %v890
      %v923 = vpack.c.b16 %v891, %v891
      %v924 = vpack.c.b16 %v892, %v892
      %v925 = vpack.c.b16 %v893, %v893
      %v926 = vpack.c.b16 %v894, %v894
      %v927 = vpack.c.b16 %v895, %v895
      %v928 = vpack.c.b16 %v896, %v896
      %v929 = vpack.c.b16 %v897, %v897
      %v930 = vpack.c.b16 %v898, %v898
      %v931 = vpack.c.b16 %v899, %v899
      %v932 = vpack.c.b16 %v900, %v900
      %v933 = vpack.c.b16 %v901, %v901
      %v934 = vpack.c.b16 %v902, %v902
      %v935 = vpack.c.b16 %v903, %v903
      %v936 = vpack.c.b16 %v904, %v904
      %v937 = vpack.c.b16 %v905, %v905
      %v938 = vpack.c.b16 %v906, %v906
      %v939 = vpack.c.b16 %v907, %v907
      %v940 = vpack.c.b16 %v908, %v908
      %v941 = vpack.c.b16 %v909, %v909
      %974 = vst [vmem:[%s315] sm:$0xf] %v910
      %975 = vst [vmem:[%s315 + $0x4] sm:$0xf] %v911
      %976 = vst [vmem:[%s315 + $0x8] sm:$0xf] %v912
      %977 = vst [vmem:[%s315 + $0xc] sm:$0xf] %v913
      %978 = vst [vmem:[%s315 + $0x10] sm:$0xf] %v914
      %979 = vst [vmem:[%s315 + $0x14] sm:$0xf] %v915
      %980 = vst [vmem:[%s315 + $0x18] sm:$0xf] %v916
      %981 = vst [vmem:[%s315 + $0x1c] sm:$0xf] %v917
      %982 = vst [vmem:[%s315 + $0x20] sm:$0xf] %v918
      %983 = vst [vmem:[%s315 + $0x24] sm:$0xf] %v919
      %984 = vst [vmem:[%s315 + $0x28] sm:$0xf] %v920
      %985 = vst [vmem:[%s315 + $0x2c] sm:$0xf] %v921
      %986 = vst [vmem:[%s315 + $0x30] sm:$0xf] %v922
      %987 = vst [vmem:[%s315 + $0x34] sm:$0xf] %v923
      %988 = vst [vmem:[%s315 + $0x38] sm:$0xf] %v924
      %989 = vst [vmem:[%s315 + $0x3c] sm:$0xf] %v925
      %990 = vst [vmem:[%s315 + $0x40] sm:$0xf] %v926
      %991 = vst [vmem:[%s315 + $0x44] sm:$0xf] %v927
      %992 = vst [vmem:[%s315 + $0x48] sm:$0xf] %v928
      %993 = vst [vmem:[%s315 + $0x4c] sm:$0xf] %v929
      %994 = vst [vmem:[%s315 + $0x50] sm:$0xf] %v930
      %995 = vst [vmem:[%s315 + $0x54] sm:$0xf] %v931
      %996 = vst [vmem:[%s315 + $0x58] sm:$0xf] %v932
      %997 = vst [vmem:[%s315 + $0x5c] sm:$0xf] %v933
      %998 = vst [vmem:[%s315 + $0x60] sm:$0xf] %v934
      %999 = vst [vmem:[%s315 + $0x64] sm:$0xf] %v935
      %1000 = vst [vmem:[%s315 + $0x68] sm:$0xf] %v936
      %1001 = vst [vmem:[%s315 + $0x6c] sm:$0xf] %v937
      %1002 = vst [vmem:[%s315 + $0x70] sm:$0xf] %v938
      %1003 = vst [vmem:[%s315 + $0x74] sm:$0xf] %v939
      %1004 = vst [vmem:[%s315 + $0x78] sm:$0xf] %v940
      %1005 = vst [vmem:[%s315 + $0x7c] sm:$0xf] %v941
      %v1006 = vmax.f32 %v490, %v530
      %v1007 = vmax.f32 %v681, %v713
      %v1008 = vmax.f32 %v494, %v534
      %v1009 = vmax.f32 %v684, %v716
      %v1010 = vmax.f32 %v500, %v540
      %v1011 = vmax.f32 %v689, %v721
      %v1012 = vmax.f32 %v504, %v544
      %v1013 = vmax.f32 %v692, %v724
      %v1014 = vmax.f32 %v510, %v550
      %v1015 = vmax.f32 %v697, %v729
      %v1016 = vmax.f32 %v514, %v554
      %v1017 = vmax.f32 %v700, %v732
      %v1018 = vmax.f32 %v520, %v560
      %v1019 = vmax.f32 %v705, %v737
      %v1020 = vmax.f32 %v524, %v564
      %v1021 = vmax.f32 %v708, %v740
      %v1022 = vmax.f32 %v570, %v610
      %v1023 = vmax.f32 %v745, %v777
      %v1024 = vmax.f32 %v574, %v614
      %v1025 = vmax.f32 %v748, %v780
      %v1026 = vmax.f32 %v580, %v620
      %v1027 = vmax.f32 %v753, %v785
      %v1028 = vmax.f32 %v584, %v624
      %v1029 = vmax.f32 %v756, %v788
      %v1030 = vmax.f32 %v590, %v630
      %v1031 = vmax.f32 %v761, %v793
      %v1032 = vmax.f32 %v594, %v634
      %v1033 = vmax.f32 %v764, %v796
      %v1034 = vmax.f32 %v600, %v640
      %v1035 = vmax.f32 %v769, %v801
      %v1036 = vmax.f32 %v604, %v644
      %v1037 = vmax.f32 %v772, %v804
      %v1038 = vmax.f32 %v1006, %v1022
      %v1039 = vmax.f32 %v1007, %v1023
      %v1040 = vmax.f32 %v1008, %v1024
      %v1041 = vmax.f32 %v1009, %v1025
      %v1042 = vmax.f32 %v1010, %v1026
      %v1043 = vmax.f32 %v1011, %v1027
      %v1044 = vmax.f32 %v1012, %v1028
      %v1045 = vmax.f32 %v1013, %v1029
      %v1046 = vmax.f32 %v1014, %v1030
      %v1047 = vmax.f32 %v1015, %v1031
      %v1048 = vmax.f32 %v1016, %v1032
      %v1049 = vmax.f32 %v1017, %v1033
      %v1050 = vmax.f32 %v1018, %v1034
      %v1051 = vmax.f32 %v1019, %v1035
      %v1052 = vmax.f32 %v1020, %v1036
      %v1053 = vmax.f32 %v1021, %v1037
      %v1054 = vld [vmem:[%s3] sm:$0x3]
      %v1056 = vlaneseq
      %v1057 = vshrl.u32 %v1056, 7
      %v1058 = vsub.s32 0, %v1057
      %v1059 = vrot.slane %v1054, %v1058
      %v1060 = vlaneseq
      %v1061 = vshrl.u32 %v1060, 7
      %v1062 = vsub.s32 1, %v1061
      %v1063 = vrot.slane %v1054, %v1062
      %v1066 = vadd.f32 %v1038, %v1059
      %v1067 = vadd.f32 %v1039, %v1063
      %v1068 = vadd.f32 %v1040, %v1059
      %v1069 = vadd.f32 %v1041, %v1063
      %v1070 = vadd.f32 %v1042, %v1059
      %v1071 = vadd.f32 %v1043, %v1063
      %v1072 = vadd.f32 %v1044, %v1059
      %v1073 = vadd.f32 %v1045, %v1063
      %v1074 = vadd.f32 %v1046, %v1059
      %v1075 = vadd.f32 %v1047, %v1063
      %v1076 = vadd.f32 %v1048, %v1059
      %v1077 = vadd.f32 %v1049, %v1063
      %v1078 = vadd.f32 %v1050, %v1059
      %v1079 = vadd.f32 %v1051, %v1063
      %v1080 = vadd.f32 %v1052, %v1059
      %v1081 = vadd.f32 %v1053, %v1063
      %1082 = vxpose.xlu0.b32.start [1/16] %v1066, 128
      %1083 = vxpose.xlu0.b32.cont [2/16] %v1068, 128
      %1084 = vxpose.xlu0.b32.cont [3/16] %v1070, 128
      %1085 = vxpose.xlu0.b32.cont [4/16] %v1072, 128
      %1086 = vxpose.xlu0.b32.cont [5/16] %v1074, 128
      %1087 = vxpose.xlu0.b32.cont [6/16] %v1076, 128
      %1088 = vxpose.xlu0.b32.cont [7/16] %v1078, 128
      %1089 = vxpose.xlu0.b32.cont [8/16] %v1080, 128
      %1090 = vxpose.xlu0.b32.cont [9/16] 0.0, 128
      %1091 = vxpose.xlu0.b32.cont [10/16] 0.0, 128
      %1092 = vxpose.xlu0.b32.cont [11/16] 0.0, 128
      %1093 = vxpose.xlu0.b32.cont [12/16] 0.0, 128
      %1094 = vxpose.xlu0.b32.cont [13/16] 0.0, 128
      %1095 = vxpose.xlu0.b32.cont [14/16] 0.0, 128
      %1096 = vxpose.xlu0.b32.cont [15/16] 0.0, 128
      %1097 = vxpose.xlu0.b32.end [16/16] 0.0, 128
      %v1098 = vpop.trf.xlu0
      %v1099 = vpop.trf.xlu0
      %v1100 = vpop.trf.xlu0
      %v1101 = vpop.trf.xlu0
      %v1102 = vpop.trf.xlu0
      %v1103 = vpop.trf.xlu0
      %v1104 = vpop.trf.xlu0
      %v1105 = vpop.trf.xlu0
      %v1106 = vpop.trf.xlu0
      %v1107 = vpop.trf.xlu0
      %v1108 = vpop.trf.xlu0
      %v1109 = vpop.trf.xlu0
      %v1110 = vpop.trf.xlu0
      %v1111 = vpop.trf.xlu0
      %v1112 = vpop.trf.xlu0
      %v1113 = vpop.trf.xlu0
      %v1114 = vpack.c.bf16 %v1099, %v1098
      %v1115 = vpack.c.bf16 %v1101, %v1100
      %v1116 = vpack.c.bf16 %v1103, %v1102
      %v1117 = vpack.c.bf16 %v1105, %v1104
      %v1118 = vpack.c.bf16 %v1107, %v1106
      %v1119 = vpack.c.bf16 %v1109, %v1108
      %v1120 = vpack.c.bf16 %v1111, %v1110
      %v1121 = vpack.c.bf16 %v1113, %v1112
      %v1130 = vunpack.c.l.b16 %v1114
      %v1131 = vunpack.c.h.b16 %v1114
      %v1132 = vunpack.c.l.b16 %v1115
      %v1133 = vunpack.c.h.b16 %v1115
      %v1134 = vunpack.c.l.b16 %v1116
      %v1135 = vunpack.c.h.b16 %v1116
      %v1136 = vunpack.c.l.b16 %v1117
      %v1137 = vunpack.c.h.b16 %v1117
      %v1138 = vunpack.c.l.b16 %v1118
      %v1139 = vunpack.c.h.b16 %v1118
      %v1140 = vunpack.c.l.b16 %v1119
      %v1141 = vunpack.c.h.b16 %v1119
      %v1142 = vunpack.c.l.b16 %v1120
      %v1143 = vunpack.c.h.b16 %v1120
      %v1144 = vunpack.c.l.b16 %v1121
      %v1145 = vunpack.c.h.b16 %v1121
      %v1146 = vpack.c.b16 %v1130, %v1130
      %v1147 = vpack.c.b16 %v1131, %v1131
      %v1148 = vpack.c.b16 %v1132, %v1132
      %v1149 = vpack.c.b16 %v1133, %v1133
      %v1150 = vpack.c.b16 %v1134, %v1134
      %v1151 = vpack.c.b16 %v1135, %v1135
      %v1152 = vpack.c.b16 %v1136, %v1136
      %v1153 = vpack.c.b16 %v1137, %v1137
      %v1154 = vpack.c.b16 %v1138, %v1138
      %v1155 = vpack.c.b16 %v1139, %v1139
      %v1156 = vpack.c.b16 %v1140, %v1140
      %v1157 = vpack.c.b16 %v1141, %v1141
      %v1158 = vpack.c.b16 %v1142, %v1142
      %v1159 = vpack.c.b16 %v1143, %v1143
      %v1160 = vpack.c.b16 %v1144, %v1144
      %v1161 = vpack.c.b16 %v1145, %v1145
      %vm1178 = vcmask 519168
      %1179 = vst.msk [vmem:[%s324] sm:$0xf] %vm1178, %v1146
      %1180 = vst.msk [vmem:[%s324 + $0x4] sm:$0xf] %vm1178, %v1147
      %1181 = vst.msk [vmem:[%s324 + $0x8] sm:$0xf] %vm1178, %v1148
      %1182 = vst.msk [vmem:[%s324 + $0xc] sm:$0xf] %vm1178, %v1149
      %1183 = vst.msk [vmem:[%s324 + $0x10] sm:$0xf] %vm1178, %v1150
      %1184 = vst.msk [vmem:[%s324 + $0x14] sm:$0xf] %vm1178, %v1151
      %1185 = vst.msk [vmem:[%s324 + $0x18] sm:$0xf] %vm1178, %v1152
      %1186 = vst.msk [vmem:[%s324 + $0x1c] sm:$0xf] %vm1178, %v1153
      %1187 = vst.msk [vmem:[%s324 + $0x20] sm:$0xf] %vm1178, %v1154
      %1188 = vst.msk [vmem:[%s324 + $0x24] sm:$0xf] %vm1178, %v1155
      %1189 = vst.msk [vmem:[%s324 + $0x28] sm:$0xf] %vm1178, %v1156
      %1190 = vst.msk [vmem:[%s324 + $0x2c] sm:$0xf] %vm1178, %v1157
      %1191 = vst.msk [vmem:[%s324 + $0x30] sm:$0xf] %vm1178, %v1158
      %1192 = vst.msk [vmem:[%s324 + $0x34] sm:$0xf] %vm1178, %v1159
      %1193 = vst.msk [vmem:[%s324 + $0x38] sm:$0xf] %vm1178, %v1160
      %1194 = vst.msk [vmem:[%s324 + $0x3c] sm:$0xf] %vm1178, %v1161
      %v1195 = vpack.c.bf16 %v1069, %v1067
      %v1196 = vpack.c.bf16 %v1073, %v1071
      %v1197 = vpack.c.bf16 %v1077, %v1075
      %v1198 = vpack.c.bf16 %v1081, %v1079
      %v1203 = vunpack.c.l.b16 %v1195
      %v1204 = vunpack.c.h.b16 %v1195
      %v1205 = vunpack.c.l.b16 %v1196
      %v1206 = vunpack.c.h.b16 %v1196
      %v1207 = vunpack.c.l.b16 %v1197
      %v1208 = vunpack.c.h.b16 %v1197
      %v1209 = vunpack.c.l.b16 %v1198
      %v1210 = vunpack.c.h.b16 %v1198
      %v1211 = vpack.c.b16 %v1203, %v1203
      %v1212 = vpack.c.b16 %v1204, %v1204
      %v1213 = vpack.c.b16 %v1205, %v1205
      %v1214 = vpack.c.b16 %v1206, %v1206
      %v1215 = vpack.c.b16 %v1207, %v1207
      %v1216 = vpack.c.b16 %v1208, %v1208
      %v1217 = vpack.c.b16 %v1209, %v1209
      %v1218 = vpack.c.b16 %v1210, %v1210
      %1227 = vst [vmem:[%s333] sm:$0xf] %v1211
      %1228 = vst [vmem:[%s333 + $0x4] sm:$0xf] %v1212
      %1229 = vst [vmem:[%s333 + $0x8] sm:$0xf] %v1213
      %1230 = vst [vmem:[%s333 + $0xc] sm:$0xf] %v1214
      %1231 = vst [vmem:[%s333 + $0x10] sm:$0xf] %v1215
      %1232 = vst [vmem:[%s333 + $0x14] sm:$0xf] %v1216
      %1233 = vst [vmem:[%s333 + $0x18] sm:$0xf] %v1217
      %1234 = vst [vmem:[%s333 + $0x1c] sm:$0xf] %v1218
      %s1235 = smul.u32 8, %s23
      %p1236 = scmp.lt.s32.totalorder %s22, 1
      %s1237 = scalar_select %p1236, %s22, 1
      %p1238 = scmp.lt.s32.totalorder %s1235, 7
      %s1239 = scalar_select %p1238, %s1235, 7
      %s1240 = smul.addr %s1237, 32
      %s1241 = sadd.s32 %s1239, %s1240
      %s1242 = smul.addr %s1241, 4
      %s1243 = scalar_lea.vmem %s4, %s1242
      %p1244 = scmp.lt.s32.totalorder %s22, 1
      %s1245 = scalar_select %p1244, %s22, 1
      %p1246 = scmp.lt.s32.totalorder %s23, 0
      %s1247 = scalar_select %p1246, %s23, 0
      %s1248 = smul.addr %s1245, 16
      %s1249 = sadd.s32 %s1247, %s1248
      %s1250 = smul.addr %s1249, 4
      %s1251 = scalar_lea.vmem %s5, %s1250
      %s1252 = smul.u32 8, %s23
      %p1253 = scmp.lt.s32.totalorder %s22, 1
      %s1254 = scalar_select %p1253, %s22, 1
      %p1255 = scmp.lt.s32.totalorder %s1252, 7
      %s1256 = scalar_select %p1255, %s1252, 7
      %s1257 = smul.addr %s1254, 8
      %s1258 = sadd.s32 %s1256, %s1257
      %s1259 = smul.addr %s1258, 4
      %s1260 = scalar_lea.vmem %s6, %s1259
      // Predicated region
      $region37: #{nl3d_wrapper_forward.2} parent=35 // pred_check
        %p1261 = pneg %p141
      $region38: #{nl3d_wrapper_forward.2} parent=35 // pred_check_branch
        %1263 = sbr.rel (%p1261) target = $region40
      $region39: #{nl3d_wrapper_forward.2} parent=35 // pred_region
        %s1264 = smul.u32 8, %s23
      $region40: #{nl3d_wrapper_forward.2} parent=35 // pred_fallthru
        _
      // Predicated region
      $region41: #{nl3d_wrapper_forward.2} parent=35 // pred_check
        %p1265 = pneg %p169
      $region42: #{nl3d_wrapper_forward.2} parent=35 // pred_check_branch
        %1267 = sbr.rel (%p1265) target = $region44
      $region43: #{nl3d_wrapper_forward.2} parent=35 // pred_region
        _
      $region44: #{nl3d_wrapper_forward.2} parent=35 // pred_fallthru
        _
      // Predicated region
      $region45: #{nl3d_wrapper_forward.2} parent=35 // pred_check
        %p1268 = pneg %p197
      $region46: #{nl3d_wrapper_forward.2} parent=35 // pred_check_branch
        %1270 = sbr.rel (%p1268) target = $region48
      $region47: #{nl3d_wrapper_forward.2} parent=35 // pred_region
        %s1271 = smul.u32 8, %s23
      $region48: #{nl3d_wrapper_forward.2} parent=35 // pred_fallthru
        _
    $region36: #{nl3d_wrapper_forward.2} parent=5 // pred_fallthru
      _
    %p1272 = scmp.le.s32.totalorder 2, %s13
    // Predicated region
    $region49: #{nl3d_wrapper_forward.2} parent=5 // pred_check
      %p1273 = pneg %p1272
    $region50: #{nl3d_wrapper_forward.2} parent=5 // pred_check_branch
      %1275 = sbr.rel (%p1273) target = $region52
    $region51: #{nl3d_wrapper_forward.2} parent=5 // pred_region
      %s1276 = ssub.s32 %s13, 2
      // Predicated region
      $region53: #{nl3d_wrapper_forward.2} parent=51 // pred_check
        %p1277 = pneg %p147
      $region54: #{nl3d_wrapper_forward.2} parent=51 // pred_check_branch
        %1279 = sbr.rel (%p1277) target = $region56
      $region55: #{nl3d_wrapper_forward.2} parent=51 // pred_region
        %s1280 = smul.u32 8, %s25
        %p1281 = scmp.lt.s32.totalorder %s24, 1
        %s1282 = scalar_select %p1281, %s24, 1
        %p1283 = scmp.lt.s32.totalorder %s1280, 7
        %s1284 = scalar_select %p1283, %s1280, 7
        %s1285 = smul.addr %s1282, 32
        %s1286 = sadd.s32 %s1284, %s1285
        %s1287 = smul.addr %s1286, 4
        %s1288 = scalar_lea.vmem %s4, %s1287
      $region56: #{nl3d_wrapper_forward.2} parent=51 // pred_fallthru
        _
      // Predicated region
      $region57: #{nl3d_wrapper_forward.2} parent=51 // pred_check
        %p1289 = pneg %p175
      $region58: #{nl3d_wrapper_forward.2} parent=51 // pred_check_branch
        %1291 = sbr.rel (%p1289) target = $region60
      $region59: #{nl3d_wrapper_forward.2} parent=51 // pred_region
        %p1292 = scmp.lt.s32.totalorder %s24, 1
        %s1293 = scalar_select %p1292, %s24, 1
        %p1294 = scmp.lt.s32.totalorder %s25, 0
        %s1295 = scalar_select %p1294, %s25, 0
        %s1296 = smul.addr %s1293, 16
        %s1297 = sadd.s32 %s1295, %s1296
        %s1298 = smul.addr %s1297, 4
        %s1299 = scalar_lea.vmem %s5, %s1298
      $region60: #{nl3d_wrapper_forward.2} parent=51 // pred_fallthru
        _
      // Predicated region
      $region61: #{nl3d_wrapper_forward.2} parent=51 // pred_check
        %p1300 = pneg %p203
      $region62: #{nl3d_wrapper_forward.2} parent=51 // pred_check_branch
        %1302 = sbr.rel (%p1300) target = $region64
      $region63: #{nl3d_wrapper_forward.2} parent=51 // pred_region
        %s1303 = smul.u32 8, %s25
        %p1304 = scmp.lt.s32.totalorder %s24, 1
        %s1305 = scalar_select %p1304, %s24, 1
        %p1306 = scmp.lt.s32.totalorder %s1303, 7
        %s1307 = scalar_select %p1306, %s1303, 7
        %s1308 = smul.addr %s1305, 8
        %s1309 = sadd.s32 %s1307, %s1308
        %s1310 = smul.addr %s1309, 4
        %s1311 = scalar_lea.vmem %s6, %s1310
      $region64: #{nl3d_wrapper_forward.2} parent=51 // pred_fallthru
        _
    $region52: #{nl3d_wrapper_forward.2} parent=5 // pred_fallthru
      _
  $region6: #{nl3d_wrapper_forward.2} parent=0 // loop_footer
    %s17 = sadd.s32 1, %s13
  $region7: #{nl3d_wrapper_forward.2} parent=0 // loop_footer_branch
    %12 = sbr.rel target = $region3
  $region8: #{nl3d_wrapper_forward.2} parent=0 // loop_exit
    _

// kernel: nl3d_wrapper_forward.3
$region0: #{nl3d_wrapper_forward.3}
  #allocation0 [shape = 'u32[]', space=smem, size = 0x4, offset = 0x4, fixed_abs, tag = 'smem constant byte address 0x4 - core index']
  #allocation1 [shape = 'u32[144,128]{1,0:T(1,128)}', space=vmem, size = 0x12000, scoped, tag = 'internal scratch']
  %s0 = inlined_call_operand.vmem [shape: bf16[2,256,128], index: 0, kind: input, shape index: {}]
  %s1 = inlined_call_operand.vmem [shape: bf16[2,128,64], index: 1, kind: input, shape index: {}]
  %s2 = inlined_call_operand.vmem [shape: bf16[2,64,128], index: 2, kind: input, shape index: {}]
  %s3 = inlined_call_operand.vmem [shape: f32[2,256,16], index: 3, kind: input, shape index: {}]
  %s4 = inlined_call_operand.vmem [shape: bf16[128,16], index: 4, kind: input, shape index: {}]
  %s5 = inlined_call_operand.vmem [shape: f32[1,16], index: 5, kind: input, shape index: {}]
  %s6 = inlined_call_operand.vmem [shape: f32[2,256,16], index: 6, kind: output, shape index: {}]
  %s7 = sld [smem:[#allocation0]]
  $region57: #{nl3d_wrapper_forward.3} parent=0
    _
  %s9 = ssub.s32 1, %s7
  %s10 = scalar_select 0, %s9, %s7
  loop: start=0, step=1, limit=6
  $region2: #{nl3d_wrapper_forward.3} parent=0 // loop_pre_header
    _
  $region3: #{nl3d_wrapper_forward.3} parent=0 // loop_header
    %s12 = sphi 0, %s16
    %p13 = scmp.ge.s32.totalorder %s12, 6
    %s19 = sphi 0, %s31
    %s20 = sphi 0, %s27
    %s21 = sphi 0, %s19
    %s22 = sphi 0, %s20
    %s23 = sphi 0, %s21
    %s24 = sphi 0, %s22
    %s36 = sphi 0, %s38
    %s39 = sphi 0, %s36
    %s40 = sphi 0, %s39
    %s56 = sphi 0, %s40
    %s62 = sphi 0, %s64
    %s65 = sphi 0, %s62
    %s66 = sphi 0, %s65
    %s82 = sphi 0, %s66
    %s88 = sphi 0, %s90
    %s91 = sphi 0, %s88
    %s92 = sphi 0, %s91
    %s108 = sphi 0, %s92
    %s116 = sphi 0, %s118
    %s119 = sphi 0, %s116
    %s120 = sphi 0, %s119
    %s136 = sphi 0, %s120
    %s140 = sphi 0, %s140
    %s142 = sphi 0, %s140
    %s143 = sphi 0, %s142
    %s157 = sphi 0, %s143
    %s161 = sphi 0, %s161
    %s163 = sphi 0, %s161
    %s164 = sphi 0, %s163
    %s178 = sphi 0, %s164
    %s186 = sphi 0, %s188
    %s189 = sphi 0, %s186
    %s190 = sphi 0, %s189
    %s206 = sphi 0, %s190
  $region4: #{nl3d_wrapper_forward.3} parent=0 // loop_header_branch
    %15 = sbr.rel (%p13) target = $region8
  $region5: #{nl3d_wrapper_forward.3} parent=0 // loop_body
    %s17 = ssub.s32 %s12, 1
    %s18 = ssub.s32 %s12, 2
    %s25 = sadd.s32 1, %s20
    %p26 = scmp.ge.s32.totalorder %s25, 2
    %s27 = scalar_select %p26, 0, %s25
    %s28 = sadd.s32 1, %s19
    %s29 = scalar_select %p26, %s28, %s19
    %p30 = scmp.ge.s32.totalorder %s29, 2
    %s31 = scalar_select %p30, 0, %s29
    %s32 = ssub.s32 %s19, %s31
    %s33 = ssub.s32 %s20, %s27
    %s34 = sor.u32 %s32, %s33
    %p35 = scmp.eq.s32.totalorder %s34, 0
    %s37 = sadd.s32 %s36, 1
    %s38 = scalar_select %p35, %s36, %s37
    %p41 = pneg %p35
    %p42 = scmp.eq.s32.totalorder %s12, 3
    %p43 = por %p41, %p42
    %p44 = scmp.ne.s32.totalorder %s36, %s39
    %p45 = scmp.eq.s32.totalorder %s12, 0
    %p46 = por %p44, %p45
    %p47 = scmp.ne.s32.totalorder %s36, %s39
    %p48 = scmp.eq.s32.totalorder %s17, 3
    %p49 = por %p47, %p48
    %p50 = scmp.ne.s32.totalorder %s39, %s40
    %p51 = scmp.eq.s32.totalorder %s17, 0
    %p52 = por %p50, %p51
    %p53 = scmp.ne.s32.totalorder %s39, %s40
    %p54 = scmp.eq.s32.totalorder %s18, 3
    %p55 = por %p53, %p54
    %p57 = scmp.ne.s32.totalorder %s40, %s56
    %p58 = scmp.eq.s32.totalorder %s18, 0
    %p59 = por %p57, %p58
    %s60 = ssub.s32 %s19, %s31
    %p61 = scmp.eq.s32.totalorder %s60, 0
    %s63 = sadd.s32 %s62, 1
    %s64 = scalar_select %p61, %s62, %s63
    %p67 = pneg %p61
    %p68 = scmp.eq.s32.totalorder %s12, 3
    %p69 = por %p67, %p68
    %p70 = scmp.ne.s32.totalorder %s62, %s65
    %p71 = scmp.eq.s32.totalorder %s12, 0
    %p72 = por %p70, %p71
    %p73 = scmp.ne.s32.totalorder %s62, %s65
    %p74 = scmp.eq.s32.totalorder %s17, 3
    %p75 = por %p73, %p74
    %p76 = scmp.ne.s32.totalorder %s65, %s66
    %p77 = scmp.eq.s32.totalorder %s17, 0
    %p78 = por %p76, %p77
    %p79 = scmp.ne.s32.totalorder %s65, %s66
    %p80 = scmp.eq.s32.totalorder %s18, 3
    %p81 = por %p79, %p80
    %p83 = scmp.ne.s32.totalorder %s66, %s82
    %p84 = scmp.eq.s32.totalorder %s18, 0
    %p85 = por %p83, %p84
    %s86 = ssub.s32 %s19, %s31
    %p87 = scmp.eq.s32.totalorder %s86, 0
    %s89 = sadd.s32 %s88, 1
    %s90 = scalar_select %p87, %s88, %s89
    %p93 = pneg %p87
    %p94 = scmp.eq.s32.totalorder %s12, 3
    %p95 = por %p93, %p94
    %p96 = scmp.ne.s32.totalorder %s88, %s91
    %p97 = scmp.eq.s32.totalorder %s12, 0
    %p98 = por %p96, %p97
    %p99 = scmp.ne.s32.totalorder %s88, %s91
    %p100 = scmp.eq.s32.totalorder %s17, 3
    %p101 = por %p99, %p100
    %p102 = scmp.ne.s32.totalorder %s91, %s92
    %p103 = scmp.eq.s32.totalorder %s17, 0
    %p104 = por %p102, %p103
    %p105 = scmp.ne.s32.totalorder %s91, %s92
    %p106 = scmp.eq.s32.totalorder %s18, 3
    %p107 = por %p105, %p106
    %p109 = scmp.ne.s32.totalorder %s92, %s108
    %p110 = scmp.eq.s32.totalorder %s18, 0
    %p111 = por %p109, %p110
    %s112 = ssub.s32 %s19, %s31
    %s113 = ssub.s32 %s20, %s27
    %s114 = sor.u32 %s112, %s113
    %p115 = scmp.eq.s32.totalorder %s114, 0
    %s117 = sadd.s32 %s116, 1
    %s118 = scalar_select %p115, %s116, %s117
    %p121 = pneg %p115
    %p122 = scmp.eq.s32.totalorder %s12, 3
    %p123 = por %p121, %p122
    %p124 = scmp.ne.s32.totalorder %s116, %s119
    %p125 = scmp.eq.s32.totalorder %s12, 0
    %p126 = por %p124, %p125
    %p127 = scmp.ne.s32.totalorder %s116, %s119
    %p128 = scmp.eq.s32.totalorder %s17, 3
    %p129 = por %p127, %p128
    %p130 = scmp.ne.s32.totalorder %s119, %s120
    %p131 = scmp.eq.s32.totalorder %s17, 0
    %p132 = por %p130, %p131
    %p133 = scmp.ne.s32.totalorder %s119, %s120
    %p134 = scmp.eq.s32.totalorder %s18, 3
    %p135 = por %p133, %p134
    %p137 = scmp.ne.s32.totalorder %s120, %s136
    %p138 = scmp.eq.s32.totalorder %s18, 0
    %p139 = por %p137, %p138
    %s141 = sadd.s32 %s140, 1
    %p144 = scmp.eq.s32.totalorder %s12, 3
    %p145 = scmp.ne.s32.totalorder %s140, %s142
    %p146 = scmp.eq.s32.totalorder %s12, 0
    %p147 = por %p145, %p146
    %p148 = scmp.ne.s32.totalorder %s140, %s142
    %p149 = scmp.eq.s32.totalorder %s17, 3
    %p150 = por %p148, %p149
    %p151 = scmp.ne.s32.totalorder %s142, %s143
    %p152 = scmp.eq.s32.totalorder %s17, 0
    %p153 = por %p151, %p152
    %p154 = scmp.ne.s32.totalorder %s142, %s143
    %p155 = scmp.eq.s32.totalorder %s18, 3
    %p156 = por %p154, %p155
    %p158 = scmp.ne.s32.totalorder %s143, %s157
    %p159 = scmp.eq.s32.totalorder %s18, 0
    %p160 = por %p158, %p159
    %s162 = sadd.s32 %s161, 1
    %p165 = scmp.eq.s32.totalorder %s12, 3
    %p166 = scmp.ne.s32.totalorder %s161, %s163
    %p167 = scmp.eq.s32.totalorder %s12, 0
    %p168 = por %p166, %p167
    %p169 = scmp.ne.s32.totalorder %s161, %s163
    %p170 = scmp.eq.s32.totalorder %s17, 3
    %p171 = por %p169, %p170
    %p172 = scmp.ne.s32.totalorder %s163, %s164
    %p173 = scmp.eq.s32.totalorder %s17, 0
    %p174 = por %p172, %p173
    %p175 = scmp.ne.s32.totalorder %s163, %s164
    %p176 = scmp.eq.s32.totalorder %s18, 3
    %p177 = por %p175, %p176
    %p179 = scmp.ne.s32.totalorder %s164, %s178
    %p180 = scmp.eq.s32.totalorder %s18, 0
    %p181 = por %p179, %p180
    %s182 = ssub.s32 %s19, %s31
    %s183 = ssub.s32 %s20, %s27
    %s184 = sor.u32 %s182, %s183
    %p185 = scmp.eq.s32.totalorder %s184, 0
    %s187 = sadd.s32 %s186, 1
    %s188 = scalar_select %p185, %s186, %s187
    %p191 = pneg %p185
    %p192 = scmp.eq.s32.totalorder %s12, 3
    %p193 = por %p191, %p192
    %p194 = scmp.ne.s32.totalorder %s186, %s189
    %p195 = scmp.eq.s32.totalorder %s12, 0
    %p196 = por %p194, %p195
    %p197 = scmp.ne.s32.totalorder %s186, %s189
    %p198 = scmp.eq.s32.totalorder %s17, 3
    %p199 = por %p197, %p198
    %p200 = scmp.ne.s32.totalorder %s189, %s190
    %p201 = scmp.eq.s32.totalorder %s17, 0
    %p202 = por %p200, %p201
    %p203 = scmp.ne.s32.totalorder %s189, %s190
    %p204 = scmp.eq.s32.totalorder %s18, 3
    %p205 = por %p203, %p204
    %p207 = scmp.ne.s32.totalorder %s190, %s206
    %p208 = scmp.eq.s32.totalorder %s18, 0
    %p209 = por %p207, %p208
    %p210 = scmp.le.s32.totalorder 1, %s12
    %p211 = scmp.lt.s32.totalorder %s12, 5
    %p212 = pnand %p210, %p211
    %p213 = pneg %p212
    // Predicated region
    $region9: #{nl3d_wrapper_forward.3} parent=5 // pred_check
      _
    $region10: #{nl3d_wrapper_forward.3} parent=5 // pred_check_branch
      %215 = sbr.rel (%p212) target = $region12
    $region11: #{nl3d_wrapper_forward.3} parent=5 // pred_region
      %s216 = ssub.s32 %s12, 1
      // Predicated region
      $region13: #{nl3d_wrapper_forward.3} parent=11 // pred_check
        %p217 = pneg %p153
      $region14: #{nl3d_wrapper_forward.3} parent=11 // pred_check_branch
        %219 = sbr.rel (%p217) target = $region16
      $region15: #{nl3d_wrapper_forward.3} parent=11 // pred_region
        _
      $region16: #{nl3d_wrapper_forward.3} parent=11 // pred_fallthru
        _
      // Predicated region
      $region17: #{nl3d_wrapper_forward.3} parent=11 // pred_check
        %p220 = pneg %p174
      $region18: #{nl3d_wrapper_forward.3} parent=11 // pred_check_branch
        %222 = sbr.rel (%p220) target = $region20
      $region19: #{nl3d_wrapper_forward.3} parent=11 // pred_region
        _
      $region20: #{nl3d_wrapper_forward.3} parent=11 // pred_fallthru
        _
    $region12: #{nl3d_wrapper_forward.3} parent=5 // pred_fallthru
      _
    %p223 = scmp.lt.s32.totalorder %s12, 4
    // Predicated region
    $region21: #{nl3d_wrapper_forward.3} parent=5 // pred_check
      %p224 = pneg %p223
    $region22: #{nl3d_wrapper_forward.3} parent=5 // pred_check_branch
      %226 = sbr.rel (%p224) target = $region24
    $region23: #{nl3d_wrapper_forward.3} parent=5 // pred_region
      // Predicated region
      $region25: #{nl3d_wrapper_forward.3} parent=23 // pred_check
        %p227 = pneg %p46
      $region26: #{nl3d_wrapper_forward.3} parent=23 // pred_check_branch
        %229 = sbr.rel (%p227) target = $region28
      $region27: #{nl3d_wrapper_forward.3} parent=23 // pred_region
        %s230 = smul.u32 16, %s20
        %p231 = scmp.lt.s32.totalorder %s19, 1
        %s232 = scalar_select %p231, %s19, 1
        %p233 = scmp.lt.s32.totalorder %s230, 31
        %s234 = scalar_select %p233, %s230, 31
        %s235 = smul.addr %s232, 32
        %s236 = sadd.s32 %s234, %s235
        %s237 = smul.addr %s236, 4
        %s238 = scalar_lea.vmem %s0, %s237
        %s239 = smul.u32 16, %s20
      $region28: #{nl3d_wrapper_forward.3} parent=23 // pred_fallthru
        _
      // Predicated region
      $region29: #{nl3d_wrapper_forward.3} parent=23 // pred_check
        %p240 = pneg %p72
      $region30: #{nl3d_wrapper_forward.3} parent=23 // pred_check_branch
        %242 = sbr.rel (%p240) target = $region32
      $region31: #{nl3d_wrapper_forward.3} parent=23 // pred_region
        %p243 = scmp.lt.s32.totalorder %s19, 1
        %s244 = scalar_select %p243, %s19, 1
        %s245 = smul.addr %s244, 16
        %s246 = smul.addr %s245, 4
        %s247 = scalar_lea.vmem %s1, %s246
      $region32: #{nl3d_wrapper_forward.3} parent=23 // pred_fallthru
        _
      // Predicated region
      $region33: #{nl3d_wrapper_forward.3} parent=23 // pred_check
        %p248 = pneg %p98
      $region34: #{nl3d_wrapper_forward.3} parent=23 // pred_check_branch
        %250 = sbr.rel (%p248) target = $region36
      $region35: #{nl3d_wrapper_forward.3} parent=23 // pred_region
        %p251 = scmp.lt.s32.totalorder %s19, 1
        %s252 = scalar_select %p251, %s19, 1
        %s253 = smul.addr %s252, 8
        %s254 = smul.addr %s253, 4
        %s255 = scalar_lea.vmem %s2, %s254
      $region36: #{nl3d_wrapper_forward.3} parent=23 // pred_fallthru
        _
      // Predicated region
      $region37: #{nl3d_wrapper_forward.3} parent=23 // pred_check
        %p256 = pneg %p126
      $region38: #{nl3d_wrapper_forward.3} parent=23 // pred_check_branch
        %258 = sbr.rel (%p256) target = $region40
      $region39: #{nl3d_wrapper_forward.3} parent=23 // pred_region
        %s259 = smul.u32 16, %s20
        %p260 = scmp.lt.s32.totalorder %s19, 1
        %s261 = scalar_select %p260, %s19, 1
        %p262 = scmp.lt.s32.totalorder %s259, 31
        %s263 = scalar_select %p262, %s259, 31
        %s264 = smul.addr %s261, 32
        %s265 = sadd.s32 %s263, %s264
        %s266 = smul.addr %s265, 8
        %s267 = scalar_lea.vmem %s3, %s266
        %s268 = smul.u32 16, %s20
      $region40: #{nl3d_wrapper_forward.3} parent=23 // pred_fallthru
        _
    $region24: #{nl3d_wrapper_forward.3} parent=5 // pred_fallthru
      _
    %p269 = scmp.le.s32.totalorder 1, %s12
    %p270 = scmp.lt.s32.totalorder %s12, 5
    %p271 = pnand %p269, %p270
    %p272 = pneg %p271
    // Predicated region
    $region41: #{nl3d_wrapper_forward.3} parent=5 // pred_check
      _
    $region42: #{nl3d_wrapper_forward.3} parent=5 // pred_check_branch
      %274 = sbr.rel (%p271) target = $region44
    $region43: #{nl3d_wrapper_forward.3} parent=5 // pred_region
      %s275 = ssub.s32 %s12, 1
      %s276 = smul.u32 16, %s22
      %p277 = scmp.lt.s32.totalorder %s21, 1
      %s278 = scalar_select %p277, %s21, 1
      %p279 = scmp.lt.s32.totalorder %s276, 31
      %s280 = scalar_select %p279, %s276, 31
      %s281 = smul.addr %s278, 32
      %s282 = sadd.s32 %s280, %s281
      %s283 = smul.addr %s282, 4
      %s284 = scalar_lea.vmem %s0, %s283
      %p285 = pneg %p52
      %p286 = pneg %p49
      %p287 = scmp.lt.s32.totalorder %s21, 1
      %s288 = scalar_select %p287, %s21, 1
      %s289 = smul.addr %s288, 16
      %s290 = smul.addr %s289, 4
      %s291 = scalar_lea.vmem %s1, %s290
      %p292 = pneg %p78
      %p293 = pneg %p75
      %p294 = scmp.lt.s32.totalorder %s21, 1
      %s295 = scalar_select %p294, %s21, 1
      %s296 = smul.addr %s295, 8
      %s297 = smul.addr %s296, 4
      %s298 = scalar_lea.vmem %s2, %s297
      %p299 = pneg %p104
      %p300 = pneg %p101
      %s301 = smul.u32 16, %s22
      %p302 = scmp.lt.s32.totalorder %s21, 1
      %s303 = scalar_select %p302, %s21, 1
      %p304 = scmp.lt.s32.totalorder %s301, 31
      %s305 = scalar_select %p304, %s301, 31
      %s306 = smul.addr %s303, 32
      %s307 = sadd.s32 %s305, %s306
      %s308 = smul.addr %s307, 8
      %s309 = scalar_lea.vmem %s3, %s308
      %p310 = pneg %p132
      %p311 = pneg %p129
      %p312 = pneg %p153
      %p313 = pneg %p150
      %p314 = pneg %p174
      %p315 = pneg %p171
      %p316 = pneg %p202
      %p317 = pneg %p199
      %s318 = smul.u32 16, %s22
      %p319 = scmp.lt.s32.totalorder %s21, 1
      %s320 = scalar_select %p319, %s21, 1
      %p321 = scmp.lt.s32.totalorder %s318, 31
      %s322 = scalar_select %p321, %s318, 31
      %s323 = smul.addr %s320, 32
      %s324 = sadd.s32 %s322, %s323
      %s325 = smul.addr %s324, 8
      %s326 = scalar_lea.vmem %s6, %s325
      %s327 = smul.u32 16, %s22
      %p328 = scmp.lt.s32.totalorder %s21, 1
      %s329 = scalar_select %p328, %s21, 1
      %p330 = scmp.lt.s32.totalorder %s327, 31
      %s331 = scalar_select %p330, %s327, 31
      %s332 = smul.addr %s329, 32
      %s333 = sadd.s32 %s331, %s332
      %s334 = smul.addr %s333, 4
      %s335 = scalar_lea.vmem %s0, %s334
      %s336 = smul.u32 16, %s22
      %p337 = scmp.lt.s32.totalorder %s21, 1
      %s338 = scalar_select %p337, %s21, 1
      %s339 = smul.addr %s338, 16
      %s340 = smul.addr %s339, 4
      %s341 = scalar_lea.vmem %s1, %s340
      %p342 = scmp.lt.s32.totalorder %s21, 1
      %s343 = scalar_select %p342, %s21, 1
      %s344 = smul.addr %s343, 8
      %s345 = smul.addr %s344, 4
      %s346 = scalar_lea.vmem %s2, %s345
      %s347 = smul.u32 16, %s22
      %p348 = scmp.lt.s32.totalorder %s21, 1
      %s349 = scalar_select %p348, %s21, 1
      %p350 = scmp.lt.s32.totalorder %s347, 31
      %s351 = scalar_select %p350, %s347, 31
      %s352 = smul.addr %s349, 32
      %s353 = sadd.s32 %s351, %s352
      %s354 = smul.addr %s353, 8
      %s355 = scalar_lea.vmem %s3, %s354
      %s356 = smul.u32 16, %s22
      %s357 = smul.u32 16, %s22
      %p358 = scmp.lt.s32.totalorder %s21, 1
      %s359 = scalar_select %p358, %s21, 1
      %p360 = scmp.lt.s32.totalorder %s357, 31
      %s361 = scalar_select %p360, %s357, 31
      %s362 = smul.addr %s359, 32
      %s363 = sadd.s32 %s361, %s362
      %s364 = smul.addr %s363, 8
      %s365 = scalar_lea.vmem %s6, %s364
      %s366 = smul.u32 16, %s22
      %v368 = vld [vmem:[%s335] sm:$0xf]
      %v369 = vld [vmem:[%s335 + $0x4] sm:$0xf]
      %v370 = vld [vmem:[%s335 + $0x8] sm:$0xf]
      %v371 = vld [vmem:[%s335 + $0xc] sm:$0xf]
      %v372 = vld [vmem:[%s335 + $0x10] sm:$0xf]
      %v373 = vld [vmem:[%s335 + $0x14] sm:$0xf]
      %v374 = vld [vmem:[%s335 + $0x18] sm:$0xf]
      %v375 = vld [vmem:[%s335 + $0x1c] sm:$0xf]
      %v376 = vld [vmem:[%s335 + $0x20] sm:$0xf]
      %v377 = vld [vmem:[%s335 + $0x24] sm:$0xf]
      %v378 = vld [vmem:[%s335 + $0x28] sm:$0xf]
      %v379 = vld [vmem:[%s335 + $0x2c] sm:$0xf]
      %v380 = vld [vmem:[%s335 + $0x30] sm:$0xf]
      %v381 = vld [vmem:[%s335 + $0x34] sm:$0xf]
      %v382 = vld [vmem:[%s335 + $0x38] sm:$0xf]
      %v383 = vld [vmem:[%s335 + $0x3c] sm:$0xf]
      %v384 = vld [vmem:[%s341] sm:$0xf]
      %v385 = vld [vmem:[%s341 + $0x4] sm:$0xf]
      %v386 = vld [vmem:[%s341 + $0x8] sm:$0xf]
      %v387 = vld [vmem:[%s341 + $0xc] sm:$0xf]
      %v388 = vld [vmem:[%s341 + $0x10] sm:$0xf]
      %v389 = vld [vmem:[%s341 + $0x14] sm:$0xf]
      %v390 = vld [vmem:[%s341 + $0x18] sm:$0xf]
      %v391 = vld [vmem:[%s341 + $0x1c] sm:$0xf]
      %v392 = vld [vmem:[%s341 + $0x20] sm:$0xf]
      %v393 = vld [vmem:[%s341 + $0x24] sm:$0xf]
      %v394 = vld [vmem:[%s341 + $0x28] sm:$0xf]
      %v395 = vld [vmem:[%s341 + $0x2c] sm:$0xf]
      %v396 = vld [vmem:[%s341 + $0x30] sm:$0xf]
      %v397 = vld [vmem:[%s341 + $0x34] sm:$0xf]
      %v398 = vld [vmem:[%s341 + $0x38] sm:$0xf]
      %v399 = vld [vmem:[%s341 + $0x3c] sm:$0xf]
      %v416 = vunpack.c.l.b16 %v368
      %v417 = vunpack.c.l.b16 %v369
      %v418 = vunpack.c.l.b16 %v370
      %v419 = vunpack.c.l.b16 %v371
      %v420 = vunpack.c.l.b16 %v372
      %v421 = vunpack.c.l.b16 %v373
      %v422 = vunpack.c.l.b16 %v374
      %v423 = vunpack.c.l.b16 %v375
      %v424 = vunpack.c.l.b16 %v376
      %v425 = vunpack.c.l.b16 %v377
      %v426 = vunpack.c.l.b16 %v378
      %v427 = vunpack.c.l.b16 %v379
      %v428 = vunpack.c.l.b16 %v380
      %v429 = vunpack.c.l.b16 %v381
      %v430 = vunpack.c.l.b16 %v382
      %v431 = vunpack.c.l.b16 %v383
      %v432 = vpack.c.b16 %v417, %v416
      %v433 = vpack.c.b16 %v419, %v418
      %v434 = vpack.c.b16 %v421, %v420
      %v435 = vpack.c.b16 %v423, %v422
      %v436 = vpack.c.b16 %v425, %v424
      %v437 = vpack.c.b16 %v427, %v426
      %v438 = vpack.c.b16 %v429, %v428
      %v439 = vpack.c.b16 %v431, %v430
      %v464 = vunpack.c.l.b16 %v384
      %v465 = vunpack.c.l.b16 %v385
      %v466 = vunpack.c.l.b16 %v386
      %v467 = vunpack.c.l.b16 %v387
      %v468 = vunpack.c.l.b16 %v388
      %v469 = vunpack.c.l.b16 %v389
      %v470 = vunpack.c.l.b16 %v390
      %v471 = vunpack.c.l.b16 %v391
      %v472 = vunpack.c.l.b16 %v392
      %v473 = vunpack.c.l.b16 %v393
      %v474 = vunpack.c.l.b16 %v394
      %v475 = vunpack.c.l.b16 %v395
      %v476 = vunpack.c.l.b16 %v396
      %v477 = vunpack.c.l.b16 %v397
      %v478 = vunpack.c.l.b16 %v398
      %v479 = vunpack.c.l.b16 %v399
      %v480 = vpack.c.b16 %v465, %v464
      %v481 = vpack.c.b16 %v467, %v466
      %v482 = vpack.c.b16 %v469, %v468
      %v483 = vpack.c.b16 %v471, %v470
      %v484 = vpack.c.b16 %v473, %v472
      %v485 = vpack.c.b16 %v475, %v474
      %v486 = vpack.c.b16 %v477, %v476
      %v487 = vpack.c.b16 %v479, %v478
      %496 = vmatprep.subr.bf16.mxu0 0
      %497 = vmatpush1.bf16.msra.mxu0 %v480
      %498 = vmatprep.subr.bf16.mxu0 0
      %499 = vmatpush1.bf16.msra.mxu0 %v481
      %500 = vmatprep.subr.bf16.mxu0 0
      %501 = vmatpush1.bf16.msra.mxu0 %v482
      %502 = vmatprep.subr.bf16.mxu0 0
      %503 = vmatpush1.bf16.msra.mxu0 %v483
      %504 = vmatprep.subr.bf16.mxu0 0
      %505 = vmatpush1.bf16.msra.mxu0 %v484
      %506 = vmatprep.subr.bf16.mxu0 0
      %507 = vmatpush1.bf16.msra.mxu0 %v485
      %508 = vmatprep.subr.bf16.mxu0 0
      %509 = vmatpush1.bf16.msra.mxu0 %v486
      %510 = vmatprep.subr.bf16.mxu0 0
      %511 = vmatpush1.bf16.msra.mxu0 %v487
      %512 = vmatprep.subr.bf16.mxu0 0
      %513 = vmatpush1.bf16.msra.mxu0 0
      %514 = vmatprep.subr.bf16.mxu0 0
      %515 = vmatpush1.bf16.msra.mxu0 0
      %516 = vmatprep.subr.bf16.mxu0 0
      %517 = vmatpush1.bf16.msra.mxu0 0
      %518 = vmatprep.subr.bf16.mxu0 0
      %519 = vmatpush1.bf16.msra.mxu0 0
      %520 = vmatprep.subr.bf16.mxu0 0
      %521 = vmatpush1.bf16.msra.mxu0 0
      %522 = vmatprep.subr.bf16.mxu0 0
      %523 = vmatpush1.bf16.msra.mxu0 0
      %524 = vmatprep.subr.bf16.mxu0 0
      %525 = vmatpush1.bf16.msra.mxu0 0
      %526 = vmatprep.subr.bf16.mxu0 0
      %527 = vmatpush1.bf16.msra.mxu0 0
      %528 = vmatprep.mubr.bf16.mxu0 0
      %529 = vmatmul.mubr.bf16.gmra.mrb[0].mxu0 %v432
      %v530 = vpop.f32.mrb[0].mxu0
      %v531 = vadd.f32 0.0, %v530
      %v532 = vpop.f32.mrb[0].mxu0
      %v533 = vpop.f32.mrb[0].mxu0
      %v534 = vadd.f32 0.0, %v533
      %v535 = vpop.f32.mrb[0].mxu0
      %536 = vmatprep.mubr.bf16.mxu0 0
      %537 = vmatmul.mubr.bf16.gmra.mrb[0].mxu0 %v433
      %v538 = vpop.f32.mrb[0].mxu0
      %v539 = vadd.f32 0.0, %v538
      %v540 = vpop.f32.mrb[0].mxu0
      %v541 = vpop.f32.mrb[0].mxu0
      %v542 = vadd.f32 0.0, %v541
      %v543 = vpop.f32.mrb[0].mxu0
      %544 = vmatprep.mubr.bf16.mxu0 0
      %545 = vmatmul.mubr.bf16.gmra.mrb[0].mxu0 %v434
      %v546 = vpop.f32.mrb[0].mxu0
      %v547 = vadd.f32 0.0, %v546
      %v548 = vpop.f32.mrb[0].mxu0
      %v549 = vpop.f32.mrb[0].mxu0
      %v550 = vadd.f32 0.0, %v549
      %v551 = vpop.f32.mrb[0].mxu0
      %552 = vmatprep.mubr.bf16.mxu0 0
      %553 = vmatmul.mubr.bf16.gmra.mrb[0].mxu0 %v435
      %v554 = vpop.f32.mrb[0].mxu0
      %v555 = vadd.f32 0.0, %v554
      %v556 = vpop.f32.mrb[0].mxu0
      %v557 = vpop.f32.mrb[0].mxu0
      %v558 = vadd.f32 0.0, %v557
      %v559 = vpop.f32.mrb[0].mxu0
      %560 = vmatprep.mubr.bf16.mxu0 0
      %561 = vmatmul.mubr.bf16.gmra.mrb[0].mxu0 %v436
      %v562 = vpop.f32.mrb[0].mxu0
      %v563 = vadd.f32 0.0, %v562
      %v564 = vpop.f32.mrb[0].mxu0
      %v565 = vpop.f32.mrb[0].mxu0
      %v566 = vadd.f32 0.0, %v565
      %v567 = vpop.f32.mrb[0].mxu0
      %568 = vmatprep.mubr.bf16.mxu0 0
      %569 = vmatmul.mubr.bf16.gmra.mrb[0].mxu0 %v437
      %v570 = vpop.f32.mrb[0].mxu0
      %v571 = vadd.f32 0.0, %v570
      %v572 = vpop.f32.mrb[0].mxu0
      %v573 = vpop.f32.mrb[0].mxu0
      %v574 = vadd.f32 0.0, %v573
      %v575 = vpop.f32.mrb[0].mxu0
      %576 = vmatprep.mubr.bf16.mxu0 0
      %577 = vmatmul.mubr.bf16.gmra.mrb[0].mxu0 %v438
      %v578 = vpop.f32.mrb[0].mxu0
      %v579 = vadd.f32 0.0, %v578
      %v580 = vpop.f32.mrb[0].mxu0
      %v581 = vpop.f32.mrb[0].mxu0
      %v582 = vadd.f32 0.0, %v581
      %v583 = vpop.f32.mrb[0].mxu0
      %584 = vmatprep.mubr.bf16.mxu0 0
      %585 = vmatmul.mubr.bf16.gmra.mrb[0].mxu0 %v439
      %v586 = vpop.f32.mrb[0].mxu0
      %v587 = vadd.f32 0.0, %v586
      %v588 = vpop.f32.mrb[0].mxu0
      %v589 = vpop.f32.mrb[0].mxu0
      %v590 = vadd.f32 0.0, %v589
      %v591 = vpop.f32.mrb[0].mxu0
      %592 = vdwg.mxu0
      %vm593 = vcmask 523264
      %v594 = vsel %vm593, %v531, -inf
      %595 = vmax.xlane.f32.xlu0 %v594
      %v596 = vpop.xlane.xlu0 %595
      %v597 = vsel %vm593, %v534, -inf
      %598 = vmax.xlane.f32.xlu0 %v597
      %v599 = vpop.xlane.xlu0 %598
      %v600 = vsel %vm593, %v539, -inf
      %601 = vmax.xlane.f32.xlu0 %v600
      %v602 = vpop.xlane.xlu0 %601
      %v603 = vsel %vm593, %v542, -inf
      %604 = vmax.xlane.f32.xlu0 %v603
      %v605 = vpop.xlane.xlu0 %604
      %v606 = vsel %vm593, %v547, -inf
      %607 = vmax.xlane.f32.xlu0 %v606
      %v608 = vpop.xlane.xlu0 %607
      %v609 = vsel %vm593, %v550, -inf
      %610 = vmax.xlane.f32.xlu0 %v609
      %v611 = vpop.xlane.xlu0 %610
      %v612 = vsel %vm593, %v555, -inf
      %613 = vmax.xlane.f32.xlu0 %v612
      %v614 = vpop.xlane.xlu0 %613
      %v615 = vsel %vm593, %v558, -inf
      %616 = vmax.xlane.f32.xlu0 %v615
      %v617 = vpop.xlane.xlu0 %616
      %v618 = vsel %vm593, %v563, -inf
      %619 = vmax.xlane.f32.xlu0 %v618
      %v620 = vpop.xlane.xlu0 %619
      %v621 = vsel %vm593, %v566, -inf
      %622 = vmax.xlane.f32.xlu0 %v621
      %v623 = vpop.xlane.xlu0 %622
      %v624 = vsel %vm593, %v571, -inf
      %625 = vmax.xlane.f32.xlu0 %v624
      %v626 = vpop.xlane.xlu0 %625
      %v627 = vsel %vm593, %v574, -inf
      %628 = vmax.xlane.f32.xlu0 %v627
      %v629 = vpop.xlane.xlu0 %628
      %v630 = vsel %vm593, %v579, -inf
      %631 = vmax.xlane.f32.xlu0 %v630
      %v632 = vpop.xlane.xlu0 %631
      %v633 = vsel %vm593, %v582, -inf
      %634 = vmax.xlane.f32.xlu0 %v633
      %v635 = vpop.xlane.xlu0 %634
      %v636 = vsel %vm593, %v587, -inf
      %637 = vmax.xlane.f32.xlu0 %v636
      %v638 = vpop.xlane.xlu0 %637
      %v639 = vsel %vm593, %v590, -inf
      %640 = vmax.xlane.f32.xlu0 %v639
      %v641 = vpop.xlane.xlu0 %640
      %v642 = vsub.f32 %v531, %v596
      %v643 = vsub.f32 %v534, %v599
      %v644 = vsub.f32 %v539, %v602
      %v645 = vsub.f32 %v542, %v605
      %v646 = vsub.f32 %v547, %v608
      %v647 = vsub.f32 %v550, %v611
      %v648 = vsub.f32 %v555, %v614
      %v649 = vsub.f32 %v558, %v617
      %v650 = vsub.f32 %v563, %v620
      %v651 = vsub.f32 %v566, %v623
      %v652 = vsub.f32 %v571, %v626
      %v653 = vsub.f32 %v574, %v629
      %v654 = vsub.f32 %v579, %v632
      %v655 = vsub.f32 %v582, %v635
      %v656 = vsub.f32 %v587, %v638
      %v657 = vsub.f32 %v590, %v641
      %v658 = vmul.f32 %v642, 1.442695
      %v659 = vpow.pop %v658
      %v660 = vmul.f32 %v643, 1.442695
      %v661 = vpow.pop %v660
      %v662 = vmul.f32 %v644, 1.442695
      %v663 = vpow.pop %v662
      %v664 = vmul.f32 %v645, 1.442695
      %v665 = vpow.pop %v664
      %v666 = vmul.f32 %v646, 1.442695
      %v667 = vpow.pop %v666
      %v668 = vmul.f32 %v647, 1.442695
      %v669 = vpow.pop %v668
      %v670 = vmul.f32 %v648, 1.442695
      %v671 = vpow.pop %v670
      %v672 = vmul.f32 %v649, 1.442695
      %v673 = vpow.pop %v672
      %v674 = vmul.f32 %v650, 1.442695
      %v675 = vpow.pop %v674
      %v676 = vmul.f32 %v651, 1.442695
      %v677 = vpow.pop %v676
      %v678 = vmul.f32 %v652, 1.442695
      %v679 = vpow.pop %v678
      %v680 = vmul.f32 %v653, 1.442695
      %v681 = vpow.pop %v680
      %v682 = vmul.f32 %v654, 1.442695
      %v683 = vpow.pop %v682
      %v684 = vmul.f32 %v655, 1.442695
      %v685 = vpow.pop %v684
      %v686 = vmul.f32 %v656, 1.442695
      %v687 = vpow.pop %v686
      %v688 = vmul.f32 %v657, 1.442695
      %v689 = vpow.pop %v688
      %v690 = vsel %vm593, %v659, 0.0
      %691 = vadd.xlane.f32.xlu0 %v690
      %v692 = vpop.xlane.xlu0 %691
      %v693 = vsel %vm593, %v661, 0.0
      %694 = vadd.xlane.f32.xlu0 %v693
      %v695 = vpop.xlane.xlu0 %694
      %v696 = vsel %vm593, %v663, 0.0
      %697 = vadd.xlane.f32.xlu0 %v696
      %v698 = vpop.xlane.xlu0 %697
      %v699 = vsel %vm593, %v665, 0.0
      %700 = vadd.xlane.f32.xlu0 %v699
      %v701 = vpop.xlane.xlu0 %700
      %v702 = vsel %vm593, %v667, 0.0
      %703 = vadd.xlane.f32.xlu0 %v702
      %v704 = vpop.xlane.xlu0 %703
      %v705 = vsel %vm593, %v669, 0.0
      %706 = vadd.xlane.f32.xlu0 %v705
      %v707 = vpop.xlane.xlu0 %706
      %v708 = vsel %vm593, %v671, 0.0
      %709 = vadd.xlane.f32.xlu0 %v708
      %v710 = vpop.xlane.xlu0 %709
      %v711 = vsel %vm593, %v673, 0.0
      %712 = vadd.xlane.f32.xlu0 %v711
      %v713 = vpop.xlane.xlu0 %712
      %v714 = vsel %vm593, %v675, 0.0
      %715 = vadd.xlane.f32.xlu0 %v714
      %v716 = vpop.xlane.xlu0 %715
      %v717 = vsel %vm593, %v677, 0.0
      %718 = vadd.xlane.f32.xlu0 %v717
      %v719 = vpop.xlane.xlu0 %718
      %v720 = vsel %vm593, %v679, 0.0
      %721 = vadd.xlane.f32.xlu0 %v720
      %v722 = vpop.xlane.xlu0 %721
      %v723 = vsel %vm593, %v681, 0.0
      %724 = vadd.xlane.f32.xlu0 %v723
      %v725 = vpop.xlane.xlu0 %724
      %v726 = vsel %vm593, %v683, 0.0
      %727 = vadd.xlane.f32.xlu0 %v726
      %v728 = vpop.xlane.xlu0 %727
      %v729 = vsel %vm593, %v685, 0.0
      %730 = vadd.xlane.f32.xlu0 %v729
      %v731 = vpop.xlane.xlu0 %730
      %v732 = vsel %vm593, %v687, 0.0
      %733 = vadd.xlane.f32.xlu0 %v732
      %v734 = vpop.xlane.xlu0 %733
      %v735 = vsel %vm593, %v689, 0.0
      %736 = vadd.xlane.f32.xlu0 %v735
      %v737 = vpop.xlane.xlu0 %736
      %v738 = vpack.c.bf16 %v661, %v659
      %v739 = vpack.c.bf16 %v665, %v663
      %v740 = vpack.c.bf16 %v669, %v667
      %v741 = vpack.c.bf16 %v673, %v671
      %v742 = vpack.c.bf16 %v677, %v675
      %v743 = vpack.c.bf16 %v681, %v679
      %v744 = vpack.c.bf16 %v685, %v683
      %v745 = vpack.c.bf16 %v689, %v687
      %v746 = vld [vmem:[%s346] sm:$0xf]
      %v747 = vld [vmem:[%s346 + $0x4] sm:$0xf]
      %v748 = vld [vmem:[%s346 + $0x8] sm:$0xf]
      %v749 = vld [vmem:[%s346 + $0xc] sm:$0xf]
      %v750 = vld [vmem:[%s346 + $0x10] sm:$0xf]
      %v751 = vld [vmem:[%s346 + $0x14] sm:$0xf]
      %v752 = vld [vmem:[%s346 + $0x18] sm:$0xf]
      %v753 = vld [vmem:[%s346 + $0x1c] sm:$0xf]
      %v762 = vunpack.c.l.b16 %v746
      %v763 = vunpack.c.l.b16 %v747
      %v764 = vunpack.c.l.b16 %v748
      %v765 = vunpack.c.l.b16 %v749
      %v766 = vunpack.c.l.b16 %v750
      %v767 = vunpack.c.l.b16 %v751
      %v768 = vunpack.c.l.b16 %v752
      %v769 = vunpack.c.l.b16 %v753
      %v770 = vpack.c.b16 %v763, %v762
      %v771 = vpack.c.b16 %v765, %v764
      %v772 = vpack.c.b16 %v767, %v766
      %v773 = vpack.c.b16 %v769, %v768
      %v779 = vsel %vm593, %v738, 0
      %v782 = vsel %vm593, %v739, 0
      %v785 = vsel %vm593, %v740, 0
      %v788 = vsel %vm593, %v741, 0
      %v791 = vsel %vm593, %v742, 0
      %v794 = vsel %vm593, %v743, 0
      %v797 = vsel %vm593, %v744, 0
      %v800 = vsel %vm593, %v745, 0
      %802 = vmatprep.subr.bf16.mxu0 0
      %803 = vmatpush1.bf16.msra.mxu0 %v770
      %804 = vmatprep.subr.bf16.mxu0 0
      %805 = vmatpush1.bf16.msra.mxu0 %v771
      %806 = vmatprep.subr.bf16.mxu0 0
      %807 = vmatpush1.bf16.msra.mxu0 %v772
      %808 = vmatprep.subr.bf16.mxu0 0
      %809 = vmatpush1.bf16.msra.mxu0 %v773
      %810 = vmatprep.subr.bf16.mxu0 0
      %811 = vmatpush1.bf16.msra.mxu0 0
      %812 = vmatprep.subr.bf16.mxu0 0
      %813 = vmatpush1.bf16.msra.mxu0 0
      %814 = vmatprep.subr.bf16.mxu0 0
      %815 = vmatpush1.bf16.msra.mxu0 0
      %816 = vmatprep.subr.bf16.mxu0 0
      %817 = vmatpush1.bf16.msra.mxu0 0
      %818 = vmatprep.subr.bf16.mxu0 0
      %819 = vmatpush1.bf16.msra.mxu0 0
      %820 = vmatprep.subr.bf16.mxu0 0
      %821 = vmatpush1.bf16.msra.mxu0 0
      %822 = vmatprep.subr.bf16.mxu0 0
      %823 = vmatpush1.bf16.msra.mxu0 0
      %824 = vmatprep.subr.bf16.mxu0 0
      %825 = vmatpush1.bf16.msra.mxu0 0
      %826 = vmatprep.subr.bf16.mxu0 0
      %827 = vmatpush1.bf16.msra.mxu0 0
      %828 = vmatprep.subr.bf16.mxu0 0
      %829 = vmatpush1.bf16.msra.mxu0 0
      %830 = vmatprep.subr.bf16.mxu0 0
      %831 = vmatpush1.bf16.msra.mxu0 0
      %832 = vmatprep.subr.bf16.mxu0 0
      %833 = vmatpush1.bf16.msra.mxu0 0
      %834 = vmatprep.mubr.bf16.mxu0 0
      %835 = vmatmul.mubr.bf16.gmra.mrb[0].mxu0 %v779
      %v836 = vpop.f32.mrb[0].mxu0
      %v837 = vadd.f32 0.0, %v836
      %v838 = vpop.f32.mrb[0].mxu0
      %v839 = vpop.f32.mrb[0].mxu0
      %v840 = vadd.f32 0.0, %v839
      %v841 = vpop.f32.mrb[0].mxu0
      %842 = vmatprep.mubr.bf16.mxu0 0
      %843 = vmatmul.mubr.bf16.gmra.mrb[0].mxu0 %v782
      %v844 = vpop.f32.mrb[0].mxu0
      %v845 = vadd.f32 0.0, %v844
      %v846 = vpop.f32.mrb[0].mxu0
      %v847 = vpop.f32.mrb[0].mxu0
      %v848 = vadd.f32 0.0, %v847
      %v849 = vpop.f32.mrb[0].mxu0
      %850 = vmatprep.mubr.bf16.mxu0 0
      %851 = vmatmul.mubr.bf16.gmra.mrb[0].mxu0 %v785
      %v852 = vpop.f32.mrb[0].mxu0
      %v853 = vadd.f32 0.0, %v852
      %v854 = vpop.f32.mrb[0].mxu0
      %v855 = vpop.f32.mrb[0].mxu0
      %v856 = vadd.f32 0.0, %v855
      %v857 = vpop.f32.mrb[0].mxu0
      %858 = vmatprep.mubr.bf16.mxu0 0
      %859 = vmatmul.mubr.bf16.gmra.mrb[0].mxu0 %v788
      %v860 = vpop.f32.mrb[0].mxu0
      %v861 = vadd.f32 0.0, %v860
      %v862 = vpop.f32.mrb[0].mxu0
      %v863 = vpop.f32.mrb[0].mxu0
      %v864 = vadd.f32 0.0, %v863
      %v865 = vpop.f32.mrb[0].mxu0
      %866 = vmatprep.mubr.bf16.mxu0 0
      %867 = vmatmul.mubr.bf16.gmra.mrb[0].mxu0 %v791
      %v868 = vpop.f32.mrb[0].mxu0
      %v869 = vadd.f32 0.0, %v868
      %v870 = vpop.f32.mrb[0].mxu0
      %v871 = vpop.f32.mrb[0].mxu0
      %v872 = vadd.f32 0.0, %v871
      %v873 = vpop.f32.mrb[0].mxu0
      %874 = vmatprep.mubr.bf16.mxu0 0
      %875 = vmatmul.mubr.bf16.gmra.mrb[0].mxu0 %v794
      %v876 = vpop.f32.mrb[0].mxu0
      %v877 = vadd.f32 0.0, %v876
      %v878 = vpop.f32.mrb[0].mxu0
      %v879 = vpop.f32.mrb[0].mxu0
      %v880 = vadd.f32 0.0, %v879
      %v881 = vpop.f32.mrb[0].mxu0
      %882 = vmatprep.mubr.bf16.mxu0 0
      %883 = vmatmul.mubr.bf16.gmra.mrb[0].mxu0 %v797
      %v884 = vpop.f32.mrb[0].mxu0
      %v885 = vadd.f32 0.0, %v884
      %v886 = vpop.f32.mrb[0].mxu0
      %v887 = vpop.f32.mrb[0].mxu0
      %v888 = vadd.f32 0.0, %v887
      %v889 = vpop.f32.mrb[0].mxu0
      %890 = vmatprep.mubr.bf16.mxu0 0
      %891 = vmatmul.mubr.bf16.gmra.mrb[0].mxu0 %v800
      %v892 = vpop.f32.mrb[0].mxu0
      %v893 = vadd.f32 0.0, %v892
      %v894 = vpop.f32.mrb[0].mxu0
      %v895 = vpop.f32.mrb[0].mxu0
      %v896 = vadd.f32 0.0, %v895
      %v897 = vpop.f32.mrb[0].mxu0
      %898 = vdwg.mxu0
      %v899 = vrcp.pop %v692
      %v900 = vrcp.pop %v695
      %v901 = vrcp.pop %v698
      %v902 = vrcp.pop %v701
      %v903 = vrcp.pop %v704
      %v904 = vrcp.pop %v707
      %v905 = vrcp.pop %v710
      %v906 = vrcp.pop %v713
      %v907 = vrcp.pop %v716
      %v908 = vrcp.pop %v719
      %v909 = vrcp.pop %v722
      %v910 = vrcp.pop %v725
      %v911 = vrcp.pop %v728
      %v912 = vrcp.pop %v731
      %v913 = vrcp.pop %v734
      %v914 = vrcp.pop %v737
      %v915 = vmul.f32 %v837, %v899
      %v916 = vmul.f32 %v840, %v900
      %v917 = vmul.f32 %v845, %v901
      %v918 = vmul.f32 %v848, %v902
      %v919 = vmul.f32 %v853, %v903
      %v920 = vmul.f32 %v856, %v904
      %v921 = vmul.f32 %v861, %v905
      %v922 = vmul.f32 %v864, %v906
      %v923 = vmul.f32 %v869, %v907
      %v924 = vmul.f32 %v872, %v908
      %v925 = vmul.f32 %v877, %v909
      %v926 = vmul.f32 %v880, %v910
      %v927 = vmul.f32 %v885, %v911
      %v928 = vmul.f32 %v888, %v912
      %v929 = vmul.f32 %v893, %v913
      %v930 = vmul.f32 %v896, %v914
      %v931 = vpack.c.bf16 %v916, %v915
      %v932 = vpack.c.bf16 %v918, %v917
      %v933 = vpack.c.bf16 %v920, %v919
      %v934 = vpack.c.bf16 %v922, %v921
      %v935 = vpack.c.bf16 %v924, %v923
      %v936 = vpack.c.bf16 %v926, %v925
      %v937 = vpack.c.bf16 %v928, %v927
      %v938 = vpack.c.bf16 %v930, %v929
      %v939 = vld [vmem:[%s4] sm:$0xf]
      %v940 = vld [vmem:[%s4 + $0x4] sm:$0xf]
      %v941 = vld [vmem:[%s4 + $0x8] sm:$0xf]
      %v942 = vld [vmem:[%s4 + $0xc] sm:$0xf]
      %v943 = vld [vmem:[%s4 + $0x10] sm:$0xf]
      %v944 = vld [vmem:[%s4 + $0x14] sm:$0xf]
      %v945 = vld [vmem:[%s4 + $0x18] sm:$0xf]
      %v946 = vld [vmem:[%s4 + $0x1c] sm:$0xf]
      %v947 = vld [vmem:[%s4 + $0x20] sm:$0xf]
      %v948 = vld [vmem:[%s4 + $0x24] sm:$0xf]
      %v949 = vld [vmem:[%s4 + $0x28] sm:$0xf]
      %v950 = vld [vmem:[%s4 + $0x2c] sm:$0xf]
      %v951 = vld [vmem:[%s4 + $0x30] sm:$0xf]
      %v952 = vld [vmem:[%s4 + $0x34] sm:$0xf]
      %v953 = vld [vmem:[%s4 + $0x38] sm:$0xf]
      %v954 = vld [vmem:[%s4 + $0x3c] sm:$0xf]
      %v955 = vld [vmem:[%s5] sm:$0x1]
      %v957 = vlaneseq
      %v958 = vshrl.u32 %v957, 7
      %v959 = vsub.s32 0, %v958
      %v960 = vrot.slane %v955, %v959
      %v978 = vunpack.c.l.b16 %v939
      %v979 = vunpack.c.l.b16 %v940
      %v980 = vunpack.c.l.b16 %v941
      %v981 = vunpack.c.l.b16 %v942
      %v982 = vunpack.c.l.b16 %v943
      %v983 = vunpack.c.l.b16 %v944
      %v984 = vunpack.c.l.b16 %v945
      %v985 = vunpack.c.l.b16 %v946
      %v986 = vunpack.c.l.b16 %v947
      %v987 = vunpack.c.l.b16 %v948
      %v988 = vunpack.c.l.b16 %v949
      %v989 = vunpack.c.l.b16 %v950
      %v990 = vunpack.c.l.b16 %v951
      %v991 = vunpack.c.l.b16 %v952
      %v992 = vunpack.c.l.b16 %v953
      %v993 = vunpack.c.l.b16 %v954
      %v994 = vpack.c.b16 %v979, %v978
      %v995 = vpack.c.b16 %v981, %v980
      %v996 = vpack.c.b16 %v983, %v982
      %v997 = vpack.c.b16 %v985, %v984
      %v998 = vpack.c.b16 %v987, %v986
      %v999 = vpack.c.b16 %v989, %v988
      %v1000 = vpack.c.b16 %v991, %v990
      %v1001 = vpack.c.b16 %v993, %v992
      %1010 = vmatprep.subr.bf16.mxu0 0
      %1011 = vmatpush1.bf16.msra.mxu0 %v994
      %1012 = vmatprep.subr.bf16.mxu0 0
      %1013 = vmatpush1.bf16.msra.mxu0 %v995
      %1014 = vmatprep.subr.bf16.mxu0 0
      %1015 = vmatpush1.bf16.msra.mxu0 %v996
      %1016 = vmatprep.subr.bf16.mxu0 0
      %1017 = vmatpush1.bf16.msra.mxu0 %v997
      %1018 = vmatprep.subr.bf16.mxu0 0
      %1019 = vmatpush1.bf16.msra.mxu0 %v998
      %1020 = vmatprep.subr.bf16.mxu0 0
      %1021 = vmatpush1.bf16.msra.mxu0 %v999
      %1022 = vmatprep.subr.bf16.mxu0 0
      %1023 = vmatpush1.bf16.msra.mxu0 %v1000
      %1024 = vmatprep.subr.bf16.mxu0 0
      %1025 = vmatpush1.bf16.msra.mxu0 %v1001
      %1026 = vmatprep.subr.bf16.mxu0 0
      %1027 = vmatpush1.bf16.msra.mxu0 0
      %1028 = vmatprep.subr.bf16.mxu0 0
      %1029 = vmatpush1.bf16.msra.mxu0 0
      %1030 = vmatprep.subr.bf16.mxu0 0
      %1031 = vmatpush1.bf16.msra.mxu0 0
      %1032 = vmatprep.subr.bf16.mxu0 0
      %1033 = vmatpush1.bf16.msra.mxu0 0
      %1034 = vmatprep.subr.bf16.mxu0 0
      %1035 = vmatpush1.bf16.msra.mxu0 0
      %1036 = vmatprep.subr.bf16.mxu0 0
      %1037 = vmatpush1.bf16.msra.mxu0 0
      %1038 = vmatprep.subr.bf16.mxu0 0
      %1039 = vmatpush1.bf16.msra.mxu0 0
      %1040 = vmatprep.subr.bf16.mxu0 0
      %1041 = vmatpush1.bf16.msra.mxu0 0
      %1042 = vmatprep.mubr.bf16.mxu0 0
      %1043 = vmatmul.mubr.bf16.gmra.mrb[0].mxu0 %v931
      %v1044 = vpop.f32.mrb[0].mxu0
      %v1045 = vadd.f32 %v960, %v1044
      %v1046 = vpop.f32.mrb[0].mxu0
      %v1047 = vpop.f32.mrb[0].mxu0
      %v1048 = vadd.f32 %v960, %v1047
      %v1049 = vpop.f32.mrb[0].mxu0
      %1050 = vmatprep.mubr.bf16.mxu0 0
      %1051 = vmatmul.mubr.bf16.gmra.mrb[0].mxu0 %v932
      %v1052 = vpop.f32.mrb[0].mxu0
      %v1053 = vadd.f32 %v960, %v1052
      %v1054 = vpop.f32.mrb[0].mxu0
      %v1055 = vpop.f32.mrb[0].mxu0
      %v1056 = vadd.f32 %v960, %v1055
      %v1057 = vpop.f32.mrb[0].mxu0
      %1058 = vmatprep.mubr.bf16.mxu0 0
      %1059 = vmatmul.mubr.bf16.gmra.mrb[0].mxu0 %v933
      %v1060 = vpop.f32.mrb[0].mxu0
      %v1061 = vadd.f32 %v960, %v1060
      %v1062 = vpop.f32.mrb[0].mxu0
      %v1063 = vpop.f32.mrb[0].mxu0
      %v1064 = vadd.f32 %v960, %v1063
      %v1065 = vpop.f32.mrb[0].mxu0
      %1066 = vmatprep.mubr.bf16.mxu0 0
      %1067 = vmatmul.mubr.bf16.gmra.mrb[0].mxu0 %v934
      %v1068 = vpop.f32.mrb[0].mxu0
      %v1069 = vadd.f32 %v960, %v1068
      %v1070 = vpop.f32.mrb[0].mxu0
      %v1071 = vpop.f32.mrb[0].mxu0
      %v1072 = vadd.f32 %v960, %v1071
      %v1073 = vpop.f32.mrb[0].mxu0
      %1074 = vmatprep.mubr.bf16.mxu0 0
      %1075 = vmatmul.mubr.bf16.gmra.mrb[0].mxu0 %v935
      %v1076 = vpop.f32.mrb[0].mxu0
      %v1077 = vadd.f32 %v960, %v1076
      %v1078 = vpop.f32.mrb[0].mxu0
      %v1079 = vpop.f32.mrb[0].mxu0
      %v1080 = vadd.f32 %v960, %v1079
      %v1081 = vpop.f32.mrb[0].mxu0
      %1082 = vmatprep.mubr.bf16.mxu0 0
      %1083 = vmatmul.mubr.bf16.gmra.mrb[0].mxu0 %v936
      %v1084 = vpop.f32.mrb[0].mxu0
      %v1085 = vadd.f32 %v960, %v1084
      %v1086 = vpop.f32.mrb[0].mxu0
      %v1087 = vpop.f32.mrb[0].mxu0
      %v1088 = vadd.f32 %v960, %v1087
      %v1089 = vpop.f32.mrb[0].mxu0
      %1090 = vmatprep.mubr.bf16.mxu0 0
      %1091 = vmatmul.mubr.bf16.gmra.mrb[0].mxu0 %v937
      %v1092 = vpop.f32.mrb[0].mxu0
      %v1093 = vadd.f32 %v960, %v1092
      %v1094 = vpop.f32.mrb[0].mxu0
      %v1095 = vpop.f32.mrb[0].mxu0
      %v1096 = vadd.f32 %v960, %v1095
      %v1097 = vpop.f32.mrb[0].mxu0
      %1098 = vmatprep.mubr.bf16.mxu0 0
      %1099 = vmatmul.mubr.bf16.gmra.mrb[0].mxu0 %v938
      %v1100 = vpop.f32.mrb[0].mxu0
      %v1101 = vadd.f32 %v960, %v1100
      %v1102 = vpop.f32.mrb[0].mxu0
      %v1103 = vpop.f32.mrb[0].mxu0
      %v1104 = vadd.f32 %v960, %v1103
      %v1105 = vpop.f32.mrb[0].mxu0
      %1106 = vdwg.mxu0
      %v1107 = vld [vmem:[%s355] sm:$0xff]
      %v1108 = vld [vmem:[%s355 + $0x8] sm:$0xff]
      %v1109 = vld [vmem:[%s355 + $0x10] sm:$0xff]
      %v1110 = vld [vmem:[%s355 + $0x18] sm:$0xff]
      %v1111 = vld [vmem:[%s355 + $0x20] sm:$0xff]
      %v1112 = vld [vmem:[%s355 + $0x28] sm:$0xff]
      %v1113 = vld [vmem:[%s355 + $0x30] sm:$0xff]
      %v1114 = vld [vmem:[%s355 + $0x38] sm:$0xff]
      %v1115 = vld [vmem:[%s355 + $0x40] sm:$0xff]
      %v1116 = vld [vmem:[%s355 + $0x48] sm:$0xff]
      %v1117 = vld [vmem:[%s355 + $0x50] sm:$0xff]
      %v1118 = vld [vmem:[%s355 + $0x58] sm:$0xff]
      %v1119 = vld [vmem:[%s355 + $0x60] sm:$0xff]
      %v1120 = vld [vmem:[%s355 + $0x68] sm:$0xff]
      %v1121 = vld [vmem:[%s355 + $0x70] sm:$0xff]
      %v1122 = vld [vmem:[%s355 + $0x78] sm:$0xff]
      %v1123 = vadd.f32 %v1045, %v1107
      %v1124 = vadd.f32 %v1048, %v1108
      %v1125 = vadd.f32 %v1053, %v1109
      %v1126 = vadd.f32 %v1056, %v1110
      %v1127 = vadd.f32 %v1061, %v1111
      %v1128 = vadd.f32 %v1064, %v1112
      %v1129 = vadd.f32 %v1069, %v1113
      %v1130 = vadd.f32 %v1072, %v1114
      %v1131 = vadd.f32 %v1077, %v1115
      %v1132 = vadd.f32 %v1080, %v1116
      %v1133 = vadd.f32 %v1085, %v1117
      %v1134 = vadd.f32 %v1088, %v1118
      %v1135 = vadd.f32 %v1093, %v1119
      %v1136 = vadd.f32 %v1096, %v1120
      %v1137 = vadd.f32 %v1101, %v1121
      %v1138 = vadd.f32 %v1104, %v1122
      %vm1139 = vcmask 130048
      %1140 = vst.msk [vmem:[%s365] sm:$0xff] %vm1139, %v1123
      %1141 = vst.msk [vmem:[%s365 + $0x8] sm:$0xff] %vm1139, %v1124
      %1142 = vst.msk [vmem:[%s365 + $0x10] sm:$0xff] %vm1139, %v1125
      %1143 = vst.msk [vmem:[%s365 + $0x18] sm:$0xff] %vm1139, %v1126
      %1144 = vst.msk [vmem:[%s365 + $0x20] sm:$0xff] %vm1139, %v1127
      %1145 = vst.msk [vmem:[%s365 + $0x28] sm:$0xff] %vm1139, %v1128
      %1146 = vst.msk [vmem:[%s365 + $0x30] sm:$0xff] %vm1139, %v1129
      %1147 = vst.msk [vmem:[%s365 + $0x38] sm:$0xff] %vm1139, %v1130
      %1148 = vst.msk [vmem:[%s365 + $0x40] sm:$0xff] %vm1139, %v1131
      %1149 = vst.msk [vmem:[%s365 + $0x48] sm:$0xff] %vm1139, %v1132
      %1150 = vst.msk [vmem:[%s365 + $0x50] sm:$0xff] %vm1139, %v1133
      %1151 = vst.msk [vmem:[%s365 + $0x58] sm:$0xff] %vm1139, %v1134
      %1152 = vst.msk [vmem:[%s365 + $0x60] sm:$0xff] %vm1139, %v1135
      %1153 = vst.msk [vmem:[%s365 + $0x68] sm:$0xff] %vm1139, %v1136
      %1154 = vst.msk [vmem:[%s365 + $0x70] sm:$0xff] %vm1139, %v1137
      %1155 = vst.msk [vmem:[%s365 + $0x78] sm:$0xff] %vm1139, %v1138
      %s1156 = smul.u32 16, %s22
      %p1157 = scmp.lt.s32.totalorder %s21, 1
      %s1158 = scalar_select %p1157, %s21, 1
      %p1159 = scmp.lt.s32.totalorder %s1156, 31
      %s1160 = scalar_select %p1159, %s1156, 31
      %s1161 = smul.addr %s1158, 32
      %s1162 = sadd.s32 %s1160, %s1161
      %s1163 = smul.addr %s1162, 8
      %s1164 = scalar_lea.vmem %s6, %s1163
      // Predicated region
      $region45: #{nl3d_wrapper_forward.3} parent=43 // pred_check
        %p1165 = pneg %p199
      $region46: #{nl3d_wrapper_forward.3} parent=43 // pred_check_branch
        %1167 = sbr.rel (%p1165) target = $region48
      $region47: #{nl3d_wrapper_forward.3} parent=43 // pred_region
        %s1168 = smul.u32 16, %s22
      $region48: #{nl3d_wrapper_forward.3} parent=43 // pred_fallthru
        _
    $region44: #{nl3d_wrapper_forward.3} parent=5 // pred_fallthru
      _
    %p1169 = scmp.le.s32.totalorder 2, %s12
    // Predicated region
    $region49: #{nl3d_wrapper_forward.3} parent=5 // pred_check
      %p1170 = pneg %p1169
    $region50: #{nl3d_wrapper_forward.3} parent=5 // pred_check_branch
      %1172 = sbr.rel (%p1170) target = $region52
    $region51: #{nl3d_wrapper_forward.3} parent=5 // pred_region
      %s1173 = ssub.s32 %s12, 2
      // Predicated region
      $region53: #{nl3d_wrapper_forward.3} parent=51 // pred_check
        %p1174 = pneg %p205
      $region54: #{nl3d_wrapper_forward.3} parent=51 // pred_check_branch
        %1176 = sbr.rel (%p1174) target = $region56
      $region55: #{nl3d_wrapper_forward.3} parent=51 // pred_region
        %s1177 = smul.u32 16, %s24
        %p1178 = scmp.lt.s32.totalorder %s23, 1
        %s1179 = scalar_select %p1178, %s23, 1
        %p1180 = scmp.lt.s32.totalorder %s1177, 31
        %s1181 = scalar_select %p1180, %s1177, 31
        %s1182 = smul.addr %s1179, 32
        %s1183 = sadd.s32 %s1181, %s1182
        %s1184 = smul.addr %s1183, 8
        %s1185 = scalar_lea.vmem %s6, %s1184
      $region56: #{nl3d_wrapper_forward.3} parent=51 // pred_fallthru
        _
    $region52: #{nl3d_wrapper_forward.3} parent=5 // pred_fallthru
      _
  $region6: #{nl3d_wrapper_forward.3} parent=0 // loop_footer
    %s16 = sadd.s32 1, %s12
  $region7: #{nl3d_wrapper_forward.3} parent=0 // loop_footer_branch
    %11 = sbr.rel target = $region3
  $region8: #{nl3d_wrapper_forward.3} parent=0 // loop_exit
    _

</llo_original>
